<compile_context>
chip_gen: v7x
topology: tpu7x:2x2x1
jax: 0.10.0
libtpu: 0.0.40
codegen_flags: <defaults>
</compile_context>

<pallas_src>
import jax
import jax.numpy as jnp
from jax.experimental import pallas as pl
from jax.experimental.pallas import tpu as pltpu

# Synthetic encoder config (small shapes).
B, S, H, F = 2, 8, 32, 64          # batch, seq, hidden, ffn width
NLABELS = 4
VOCAB = 128                        # stands in for tokenizer_size=30523
LN_EPS = 1e-5                      # PyTorch nn.LayerNorm default eps
HP = 128                           # lane-padded width (hidden / ffn / labels)
BS = B * S                         # 16 flattened token rows (2 sublane tiles)
QPAD = 8                           # CLS rows padded to one full sublane tile
assert B <= QPAD <= BS and BS % 8 == 0 and VOCAB == HP

# Slots inside the packed [4*HP, HP] bf16 weight stack (non-QKV matrices).
_WO, _W1, _W2, _WCLS = range(4)
# Rows inside the packed [16, HP] f32 vector stack (biases / LN gammas & betas).
(_BQ, _BK, _BV, _BO, _LN1G, _LN1B, _B1, _B2,
 _LN2G, _LN2B, _CLNG, _CLNB, _BCLS) = range(13)
_NVEC = 16                         # 13 rows padded to a multiple of 8

_SQRT_HALF = 0.7071067811865476


def _erf_f32(x):
    # Abramowitz & Stegun 7.1.26 rational approximation, |err| <= 1.5e-7
    # (f32-exact); uses only exp/abs/where so it is guaranteed to lower.
    z = jnp.abs(x)
    t = 1.0 / (1.0 + 0.3275911 * z)
    poly = ((((1.061405429 * t - 1.453152027) * t + 1.421413741) * t
             - 0.284496736) * t + 0.254829592) * t
    e = 1.0 - poly * jnp.exp(-z * z)
    return jnp.where(x >= 0, e, -e)


def _gelu_exact(x):
    # Exact (erf-based) GELU, matching torch / HF BERT 'gelu'.
    return 0.5 * x * (1.0 + _erf_f32(x * _SQRT_HALF))


# ---------------------------------------------------------------------------
# Fused kernel: embedding + encoder layer (CLS queries) + classifier head.
# ---------------------------------------------------------------------------
def fused_classifier_kernel(ids_ref, emb_ref, pos_ref, wqkv_ref, wrest_ref,
                            vec_ref, o_ref):
    """ids_ref   [BS, 1]    i32  token ids, row-permuted so CLS rows come first.
       emb_ref   [VOCAB, HP] bf16 token-embedding table (cols >= H are zero).
       pos_ref   [BS, HP]   f32  positional rows, already in permuted order.
       wqkv_ref  [HP, 3*HP] bf16 fused [WQ | WK | WV] (zero-padded blocks).
       wrest_ref [4*HP, HP] bf16 row-stacked WO, W1, W2, WCLS (zero-padded).
       vec_ref   [16, HP]   f32  packed biases / LN params (zero-padded rows).
       o_ref     [QPAD, HP] f32  logits in rows [0,B), cols [0,NLABELS)."""

    # ----- Embedding lookup fused in-kernel as a one-hot matmul gather -------
    # TODO(synk): for a real 30523-entry vocab use PrefetchScalarGridSpec ids
    # in SMEM + a DMA row gather instead of a one-hot matmul over 128 lanes.
    ids = ids_ref[...]                                              # [BS, 1] i32
    vocab_iota = jax.lax.broadcasted_iota(jnp.int32, (BS, VOCAB), 1)
    one_hot = jnp.where(ids == vocab_iota, 1.0, 0.0).astype(jnp.bfloat16)
    x = jnp.dot(one_hot, emb_ref[...],
                preferred_element_type=jnp.float32) + pos_ref[...]  # [BS, HP] f32
    x_bf = x.astype(jnp.bfloat16)                                   # MXU operand

    def w(i):    # [HP, HP] bf16 weight slab — fed to the MXU as-is (no upcast)
        return wrest_ref[i * HP:(i + 1) * HP, :]

    def vec(i):  # [1, HP] f32 bias / LN row (already f32; no per-row casts)
        return vec_ref[i:i + 1, :]

    lane = jax.lax.broadcasted_iota(jnp.int32, (1, HP), 1)
    lane_mask = (lane < H).astype(jnp.float32)                      # real-H lanes

    def layernorm(y, g, b):
        # Pad lanes of y are zero, so sums over HP equal sums over real H.
        mean = jnp.sum(y, axis=-1, keepdims=True) * (1.0 / H)
        c = (y - mean) * lane_mask
        var = jnp.sum(c * c, axis=-1, keepdims=True) * (1.0 / H)
        return c * jax.lax.rsqrt(var + LN_EPS) * g + b              # pads -> 0

    # ----- Fused QKV: one bf16 MXU matmul for all tokens ---------------------
    qkv = jnp.dot(x_bf, wqkv_ref[...],
                  preferred_element_type=jnp.float32)               # [BS, 3*HP]
    # CLS rows are rows [0, B) (pre-ordered); rows [B, QPAD) are don't-care
    # filler so every downstream tensor is a full (8, 128) sublane tile.
    q = qkv[:QPAD, 0 * HP:1 * HP] + vec(_BQ)                        # [QPAD, HP]
    k = qkv[:, 1 * HP:2 * HP] + vec(_BK)                            # [BS, HP]
    v = qkv[:, 2 * HP:3 * HP] + vec(_BV)                            # [BS, HP]

    # Scores of the padded CLS queries against ALL BS keys, then mask keys
    # that belong to a different batch (rows were permuted: key row c is
    # batch c if c < B, else batch (c - B) // (S - 1) — computed w/o int div).
    scores = jax.lax.dot_general(
        q, k, (((1,), (1,)), ((), ())),
        preferred_element_type=jnp.float32) * (1.0 / (H ** 0.5))    # [QPAD, BS]
    row = jax.lax.broadcasted_iota(jnp.int32, (QPAD, BS), 0)
    col = jax.lax.broadcasted_iota(jnp.int32, (QPAD, BS), 1)
    kb = jnp.zeros_like(col)
    for b in range(1, B):                                           # static loop
        kb = kb + (col >= B + b * (S - 1)).astype(jnp.int32)
    key_batch = jnp.where(col < B, col, kb)
    scores = jnp.where(key_batch == row, scores, jnp.float32(-1e30))

    m = jnp.max(scores, axis=-1, keepdims=True)
    p = jnp.exp(scores - m)
    attn = p / jnp.sum(p, axis=-1, keepdims=True)   # exact recip (parity)

    ctx = jnp.dot(attn, v, preferred_element_type=jnp.float32)      # [QPAD, HP]
    attn_out = jnp.dot(ctx.astype(jnp.bfloat16), w(_WO),
                       preferred_element_type=jnp.float32) + vec(_BO)
    h1 = layernorm(x[:QPAD, :] + attn_out, vec(_LN1G), vec(_LN1B))

    ffn = jnp.dot(h1.astype(jnp.bfloat16), w(_W1),
                  preferred_element_type=jnp.float32) + vec(_B1)
    ffn = _gelu_exact(ffn)                                          # exact GELU
    ffn = jnp.dot(ffn.astype(jnp.bfloat16), w(_W2),
                  preferred_element_type=jnp.float32) + vec(_B2)
    h2 = layernorm(h1 + ffn, vec(_LN2G), vec(_LN2B))                # CLS hidden

    # Classifier head: LayerNorm -> Dropout(0.3)=identity (eval) -> Linear.
    normed = layernorm(h2, vec(_CLNG), vec(_CLNB))
    logits = jnp.dot(normed.astype(jnp.bfloat16), w(_WCLS),
                     preferred_element_type=jnp.float32) + vec(_BCLS)
    o_ref[...] = logits                          # full (8, 128) tile store


# ---------------------------------------------------------------------------
# Forward: reorder token ids (CLS rows first) -> ONE fused Pallas kernel.
# ---------------------------------------------------------------------------
@jax.jit
def single_classifier_forward(input_ids, params):
    # TODO(synk): attention_mask handling omitted (all-ones mask assumed).
    # Pre-order rows so CLS tokens occupy contiguous leading sublanes:
    #   [CLS_0, .., CLS_{B-1}, b0 tokens 1..S-1, b1 tokens 1..S-1, ...]
    ids_perm = jnp.concatenate(
        [input_ids[:, 0], input_ids[:, 1:].reshape(-1)]
    ).reshape(BS, 1).astype(jnp.int32)

    logits_pad = pl.pallas_call(
        fused_classifier_kernel,
        out_shape=jax.ShapeDtypeStruct((QPAD, HP), jnp.float32),
        in_specs=[pl.BlockSpec(memory_space=pltpu.MemorySpace.VMEM)
                  for _ in range(6)],
        out_specs=pl.BlockSpec(memory_space=pltpu.MemorySpace.VMEM),
        # TODO(synk): at real BERT shapes (H~768, S~512, B>=16) add a grid over
        # batch-row tiles with compiler_params=pltpu.CompilerParams(
        # dimension_semantics=("parallel", ...)) so both v7x TensorCores are
        # used, pick MXU-facing tile dims that are multiples of 256 (v6e/v7x;
        # 128 suffices on v5e), and budget double-buffered tiles + the fused
        # [H, 3H] bf16 QKV block against v7x's 64 MiB VMEM via
        # vmem_limit_bytes. At the current toy shapes (one 8x128 output tile)
        # a grid would only add ~0.35 us/step overhead.
    )(ids_perm, params['tok_emb'], params['pos_rows'],
      params['w_qkv'], params['w_rest'], params['vec_stack'])
    return logits_pad[:B, :NLABELS]                                 # [B, NLABELS]


def init_params(key):
    ks = jax.random.split(key, 9)
    n = lambda k, shape, scale=0.02: scale * jax.random.normal(k, shape, jnp.float32)

    def pad_mat(m):
        return jnp.pad(m, ((0, HP - m.shape[0]), (0, HP - m.shape[1])))

    def pad_vec(v):
        return jnp.pad(v, (0, HP - v.shape[0]))

    wq, wk, wv, wo = (n(ks[i], (H, H)) for i in range(4))
    w1 = n(ks[4], (H, F))
    w2 = n(ks[5], (F, H))
    wcls = n(ks[6], (H, NLABELS))

    # Fused QKV packed column-wise -> one [HP, 3*HP] bf16 MXU operand.
    w_qkv = jnp.concatenate([pad_mat(m) for m in (wq, wk, wv)],
                            axis=1).astype(jnp.bfloat16)
    # Remaining matrices row-stacked -> [4*HP, HP] bf16.
    w_rest = jnp.concatenate([pad_mat(m) for m in (wo, w1, w2, wcls)],
                             axis=0).astype(jnp.bfloat16)

    ones_h = jnp.ones((H,), jnp.float32)
    zeros_h = jnp.zeros((H,), jnp.float32)
    vecs = [
        zeros_h, zeros_h, zeros_h, zeros_h,        # bq, bk, bv, bo
        ones_h, zeros_h,                           # ln1 gamma / beta
        jnp.zeros((F,), jnp.float32),              # b1
        zeros_h,                                   # b2
        ones_h, zeros_h,                           # ln2 gamma / beta
        ones_h, zeros_h,                           # classifier LayerNorm g / b
        jnp.zeros((NLABELS,), jnp.float32),        # classifier bias
    ]
    vec_stack = jnp.stack([pad_vec(v) for v in vecs], axis=0)          # [13, HP]
    vec_stack = jnp.pad(vec_stack, ((0, _NVEC - len(vecs)), (0, 0)))   # [16, HP] f32

    tok_emb = jnp.pad(n(ks[7], (VOCAB, H)),
                      ((0, 0), (0, HP - H))).astype(jnp.bfloat16)      # [VOCAB, HP]
    pos_emb = jnp.pad(n(ks[8], (S, H)), ((0, 0), (0, HP - H)))         # [S, HP] f32
    # Positional rows pre-permuted to match the CLS-first row ordering.
    pos_perm = jnp.array([0] * B + list(range(1, S)) * B, jnp.int32)   # [BS]
    pos_rows = pos_emb[pos_perm]                                       # [BS, HP] f32

    return {
        'tok_emb': tok_emb,
        'pos_rows': pos_rows,
        'w_qkv': w_qkv,
        'w_rest': w_rest,
        'vec_stack': vec_stack,
    }


if __name__ == "__main__":
    key = jax.random.PRNGKey(0)
    k_param, k_ids = jax.random.split(key)
    params = init_params(k_param)
    input_ids = jax.random.randint(k_ids, (B, S), 0, VOCAB, dtype=jnp.int32)

    logits = single_classifier_forward(input_ids, params)
    jax.block_until_ready(logits)
    assert logits.shape == (B, NLABELS)
    assert bool(jnp.all(jnp.isfinite(logits)))
    print("KERNEL_OK")
</pallas_src>

<mosaic_0001>
module attributes {stable_mosaic.version = 11 : i64} {
  func.func @fused_classifier_kernel(%arg0: memref<16x1xi32, #tpu.memory_space<vmem>>, %arg1: memref<128x128xbf16, #tpu.memory_space<vmem>>, %arg2: memref<16x128xf32, #tpu.memory_space<vmem>>, %arg3: memref<128x384xbf16, #tpu.memory_space<vmem>>, %arg4: memref<512x128xbf16, #tpu.memory_space<vmem>>, %arg5: memref<16x128xf32, #tpu.memory_space<vmem>>, %arg6: memref<8x128xf32, #tpu.memory_space<vmem>>) attributes {dimension_semantics = [], scalar_prefetch = 0 : i64, scratch_operands = 0 : i64, tpu.core_type = #tpu.core_type<tc>} {
    %c0 = arith.constant 0 : index
    %c0_0 = arith.constant 0 : index
    %0 = vector.load %arg0[%c0, %c0_0] : memref<16x1xi32, #tpu.memory_space<vmem>>, vector<16x1xi32>
    %1 = tpu.iota {dimensions = array<i32: 1>} : vector<16x128xi32>
    %2 = vector.broadcast %0 : vector<16x1xi32> to vector<16x128xi32>
    %3 = arith.cmpi eq, %2, %1 : vector<16x128xi32>
    %cst = arith.constant 1.000000e+00 : f32
    %cst_1 = arith.constant 0.000000e+00 : f32
    %4 = vector.broadcast %cst : f32 to vector<16x128xf32>
    %5 = vector.broadcast %cst_1 : f32 to vector<16x128xf32>
    %6 = arith.select %3, %4, %5 : vector<16x128xi1>, vector<16x128xf32>
    %7 = arith.truncf %6 : vector<16x128xf32> to vector<16x128xbf16>
    %c0_2 = arith.constant 0 : index
    %c0_3 = arith.constant 0 : index
    %8 = vector.load %arg1[%c0_2, %c0_3] : memref<128x128xbf16, #tpu.memory_space<vmem>>, vector<128x128xbf16>
    %cst_4 = arith.constant dense<0.000000e+00> : vector<16x128xf32>
    %9 = tpu.matmul %7, %8, %cst_4 {dimension_numbers = #tpu.dot_dimension_numbers<[1], [0], [0], [1], [0, 0, 1, 1], [], []>} : vector<16x128xbf16>, vector<128x128xbf16>, vector<16x128xf32> -> vector<16x128xf32>
    %c0_5 = arith.constant 0 : index
    %c0_6 = arith.constant 0 : index
    %10 = vector.load %arg2[%c0_5, %c0_6] : memref<16x128xf32, #tpu.memory_space<vmem>>, vector<16x128xf32>
    %11 = arith.addf %9, %10 : vector<16x128xf32>
    %12 = arith.truncf %11 : vector<16x128xf32> to vector<16x128xbf16>
    %13 = tpu.iota {dimensions = array<i32: 1>} : vector<1x128xi32>
    %c32_i32 = arith.constant 32 : i32
    %14 = vector.broadcast %c32_i32 : i32 to vector<1x128xi32>
    %15 = arith.cmpi slt, %13, %14 : vector<1x128xi32>
    %16 = arith.extui %15 : vector<1x128xi1> to vector<1x128xi32>
    %17 = arith.sitofp %16 : vector<1x128xi32> to vector<1x128xf32>
    %c0_7 = arith.constant 0 : index
    %c0_8 = arith.constant 0 : index
    %18 = vector.load %arg3[%c0_7, %c0_8] : memref<128x384xbf16, #tpu.memory_space<vmem>>, vector<128x384xbf16>
    %cst_9 = arith.constant dense<0.000000e+00> : vector<16x384xf32>
    %19 = tpu.matmul %12, %18, %cst_9 {dimension_numbers = #tpu.dot_dimension_numbers<[1], [0], [0], [1], [0, 0, 1, 1], [], []>} : vector<16x128xbf16>, vector<128x384xbf16>, vector<16x384xf32> -> vector<16x384xf32>
    %20 = vector.extract_strided_slice %19 {offsets = [0, 0], sizes = [8, 128], strides = [1, 1]} : vector<16x384xf32> to vector<8x128xf32>
    %c0_10 = arith.constant 0 : index
    %c0_11 = arith.constant 0 : index
    %21 = vector.load %arg5[%c0_10, %c0_11] : memref<16x128xf32, #tpu.memory_space<vmem>>, vector<1x128xf32>
    %22 = vector.broadcast %21 : vector<1x128xf32> to vector<8x128xf32>
    %23 = arith.addf %20, %22 : vector<8x128xf32>
    %24 = vector.extract_strided_slice %19 {offsets = [0, 128], sizes = [16, 128], strides = [1, 1]} : vector<16x384xf32> to vector<16x128xf32>
    %c1 = arith.constant 1 : index
    %c0_12 = arith.constant 0 : index
    %25 = vector.load %arg5[%c1, %c0_12] : memref<16x128xf32, #tpu.memory_space<vmem>>, vector<1x128xf32>
    %26 = vector.broadcast %25 : vector<1x128xf32> to vector<16x128xf32>
    %27 = arith.addf %24, %26 : vector<16x128xf32>
    %28 = vector.extract_strided_slice %19 {offsets = [0, 256], sizes = [16, 128], strides = [1, 1]} : vector<16x384xf32> to vector<16x128xf32>
    %c2 = arith.constant 2 : index
    %c0_13 = arith.constant 0 : index
    %29 = vector.load %arg5[%c2, %c0_13] : memref<16x128xf32, #tpu.memory_space<vmem>>, vector<1x128xf32>
    %30 = vector.broadcast %29 : vector<1x128xf32> to vector<16x128xf32>
    %31 = arith.addf %28, %30 : vector<16x128xf32>
    %cst_14 = arith.constant dense<0.000000e+00> : vector<8x16xf32>
    %32 = tpu.matmul %23, %27, %cst_14 {dimension_numbers = #tpu.dot_dimension_numbers<[1], [1], [0], [0], [0, 0, 1, 0], [], []>} : vector<8x128xf32>, vector<16x128xf32>, vector<8x16xf32> -> vector<8x16xf32>
    %cst_15 = arith.constant 0.176776692 : f32
    %33 = vector.broadcast %cst_15 : f32 to vector<8x16xf32>
    %34 = arith.mulf %32, %33 : vector<8x16xf32>
    %35 = tpu.iota {dimensions = array<i32: 0>} : vector<8x16xi32>
    %36 = tpu.iota {dimensions = array<i32: 1>} : vector<8x16xi32>
    %c0_i32 = arith.constant 0 : i32
    %37 = vector.broadcast %c0_i32 : i32 to vector<8x16xi32>
    %c9_i32 = arith.constant 9 : i32
    %38 = vector.broadcast %c9_i32 : i32 to vector<8x16xi32>
    %39 = arith.cmpi sge, %36, %38 : vector<8x16xi32>
    %40 = arith.extui %39 : vector<8x16xi1> to vector<8x16xi32>
    %41 = arith.addi %37, %40 : vector<8x16xi32>
    %c2_i32 = arith.constant 2 : i32
    %42 = vector.broadcast %c2_i32 : i32 to vector<8x16xi32>
    %43 = arith.cmpi slt, %36, %42 : vector<8x16xi32>
    %44 = arith.select %43, %36, %41 : vector<8x16xi1>, vector<8x16xi32>
    %45 = arith.cmpi eq, %44, %35 : vector<8x16xi32>
    %cst_16 = arith.constant -1.000000e+30 : f32
    %46 = vector.broadcast %cst_16 : f32 to vector<8x16xf32>
    %47 = arith.select %45, %34, %46 : vector<8x16xi1>, vector<8x16xf32>
    %cst_17 = arith.constant dense<0xFF800000> : vector<8xf32>
    %48 = vector.multi_reduction <maximumf>, %47, %cst_17 [1] : vector<8x16xf32> to vector<8xf32>
    %49 = vector.shape_cast %48 : vector<8xf32> to vector<8x1xf32>
    %50 = vector.broadcast %49 : vector<8x1xf32> to vector<8x16xf32>
    %51 = arith.subf %47, %50 : vector<8x16xf32>
    %52 = math.exp %51 : vector<8x16xf32>
    %cst_18 = arith.constant dense<0.000000e+00> : vector<8xf32>
    %53 = vector.multi_reduction <add>, %52, %cst_18 [1] : vector<8x16xf32> to vector<8xf32>
    %54 = vector.shape_cast %53 : vector<8xf32> to vector<8x1xf32>
    %55 = vector.broadcast %54 : vector<8x1xf32> to vector<8x16xf32>
    %56 = arith.divf %52, %55 : vector<8x16xf32>
    %cst_19 = arith.constant dense<0.000000e+00> : vector<8x128xf32>
    %57 = tpu.matmul %56, %31, %cst_19 {dimension_numbers = #tpu.dot_dimension_numbers<[1], [0], [0], [1], [0, 0, 1, 1], [], []>} : vector<8x16xf32>, vector<16x128xf32>, vector<8x128xf32> -> vector<8x128xf32>
    %58 = arith.truncf %57 : vector<8x128xf32> to vector<8x128xbf16>
    %c0_20 = arith.constant 0 : index
    %c0_21 = arith.constant 0 : index
    %59 = vector.load %arg4[%c0_20, %c0_21] : memref<512x128xbf16, #tpu.memory_space<vmem>>, vector<128x128xbf16>
    %cst_22 = arith.constant dense<0.000000e+00> : vector<8x128xf32>
    %60 = tpu.matmul %58, %59, %cst_22 {dimension_numbers = #tpu.dot_dimension_numbers<[1], [0], [0], [1], [0, 0, 1, 1], [], []>} : vector<8x128xbf16>, vector<128x128xbf16>, vector<8x128xf32> -> vector<8x128xf32>
    %c3 = arith.constant 3 : index
    %c0_23 = arith.constant 0 : index
    %61 = vector.load %arg5[%c3, %c0_23] : memref<16x128xf32, #tpu.memory_space<vmem>>, vector<1x128xf32>
    %62 = vector.broadcast %61 : vector<1x128xf32> to vector<8x128xf32>
    %63 = arith.addf %60, %62 : vector<8x128xf32>
    %64 = vector.extract_strided_slice %11 {offsets = [0, 0], sizes = [8, 128], strides = [1, 1]} : vector<16x128xf32> to vector<8x128xf32>
    %65 = arith.addf %64, %63 : vector<8x128xf32>
    %c4 = arith.constant 4 : index
    %c0_24 = arith.constant 0 : index
    %66 = vector.load %arg5[%c4, %c0_24] : memref<16x128xf32, #tpu.memory_space<vmem>>, vector<1x128xf32>
    %c5 = arith.constant 5 : index
    %c0_25 = arith.constant 0 : index
    %67 = vector.load %arg5[%c5, %c0_25] : memref<16x128xf32, #tpu.memory_space<vmem>>, vector<1x128xf32>
    %cst_26 = arith.constant dense<0.000000e+00> : vector<8xf32>
    %68 = vector.multi_reduction <add>, %65, %cst_26 [1] : vector<8x128xf32> to vector<8xf32>
    %69 = vector.shape_cast %68 : vector<8xf32> to vector<8x1xf32>
    %cst_27 = arith.constant 3.125000e-02 : f32
    %70 = vector.broadcast %cst_27 : f32 to vector<8x1xf32>
    %71 = arith.mulf %69, %70 : vector<8x1xf32>
    %72 = vector.broadcast %71 : vector<8x1xf32> to vector<8x128xf32>
    %73 = arith.subf %65, %72 : vector<8x128xf32>
    %74 = vector.broadcast %17 : vector<1x128xf32> to vector<8x128xf32>
    %75 = arith.mulf %73, %74 : vector<8x128xf32>
    %76 = arith.mulf %75, %75 : vector<8x128xf32>
    %cst_28 = arith.constant dense<0.000000e+00> : vector<8xf32>
    %77 = vector.multi_reduction <add>, %76, %cst_28 [1] : vector<8x128xf32> to vector<8xf32>
    %78 = vector.shape_cast %77 : vector<8xf32> to vector<8x1xf32>
    %cst_29 = arith.constant 3.125000e-02 : f32
    %79 = vector.broadcast %cst_29 : f32 to vector<8x1xf32>
    %80 = arith.mulf %78, %79 : vector<8x1xf32>
    %cst_30 = arith.constant 9.99999974E-6 : f32
    %81 = vector.broadcast %cst_30 : f32 to vector<8x1xf32>
    %82 = arith.addf %80, %81 : vector<8x1xf32>
    %83 = math.rsqrt %82 : vector<8x1xf32>
    %84 = vector.broadcast %83 : vector<8x1xf32> to vector<8x128xf32>
    %85 = arith.mulf %75, %84 : vector<8x128xf32>
    %86 = vector.broadcast %66 : vector<1x128xf32> to vector<8x128xf32>
    %87 = arith.mulf %85, %86 : vector<8x128xf32>
    %88 = vector.broadcast %67 : vector<1x128xf32> to vector<8x128xf32>
    %89 = arith.addf %87, %88 : vector<8x128xf32>
    %90 = arith.truncf %89 : vector<8x128xf32> to vector<8x128xbf16>
    %c128 = arith.constant 128 : index
    %c0_31 = arith.constant 0 : index
    %91 = vector.load %arg4[%c128, %c0_31] : memref<512x128xbf16, #tpu.memory_space<vmem>>, vector<128x128xbf16>
    %cst_32 = arith.constant dense<0.000000e+00> : vector<8x128xf32>
    %92 = tpu.matmul %90, %91, %cst_32 {dimension_numbers = #tpu.dot_dimension_numbers<[1], [0], [0], [1], [0, 0, 1, 1], [], []>} : vector<8x128xbf16>, vector<128x128xbf16>, vector<8x128xf32> -> vector<8x128xf32>
    %c6 = arith.constant 6 : index
    %c0_33 = arith.constant 0 : index
    %93 = vector.load %arg5[%c6, %c0_33] : memref<16x128xf32, #tpu.memory_space<vmem>>, vector<1x128xf32>
    %94 = vector.broadcast %93 : vector<1x128xf32> to vector<8x128xf32>
    %95 = arith.addf %92, %94 : vector<8x128xf32>
    %cst_34 = arith.constant 5.000000e-01 : f32
    %96 = vector.broadcast %cst_34 : f32 to vector<8x128xf32>
    %97 = arith.mulf %96, %95 : vector<8x128xf32>
    %cst_35 = arith.constant 0.707106769 : f32
    %98 = vector.broadcast %cst_35 : f32 to vector<8x128xf32>
    %99 = arith.mulf %95, %98 : vector<8x128xf32>
    %100 = math.absf %99 : vector<8x128xf32>
    %cst_36 = arith.constant 0.327591091 : f32
    %101 = vector.broadcast %cst_36 : f32 to vector<8x128xf32>
    %102 = arith.mulf %101, %100 : vector<8x128xf32>
    %cst_37 = arith.constant 1.000000e+00 : f32
    %103 = vector.broadcast %cst_37 : f32 to vector<8x128xf32>
    %104 = arith.addf %103, %102 : vector<8x128xf32>
    %cst_38 = arith.constant 1.000000e+00 : f32
    %105 = vector.broadcast %cst_38 : f32 to vector<8x128xf32>
    %106 = arith.divf %105, %104 : vector<8x128xf32>
    %cst_39 = arith.constant 1.06140542 : f32
    %107 = vector.broadcast %cst_39 : f32 to vector<8x128xf32>
    %108 = arith.mulf %107, %106 : vector<8x128xf32>
    %cst_40 = arith.constant 1.45315206 : f32
    %109 = vector.broadcast %cst_40 : f32 to vector<8x128xf32>
    %110 = arith.subf %108, %109 : vector<8x128xf32>
    %111 = arith.mulf %110, %106 : vector<8x128xf32>
    %cst_41 = arith.constant 1.42141378 : f32
    %112 = vector.broadcast %cst_41 : f32 to vector<8x128xf32>
    %113 = arith.addf %111, %112 : vector<8x128xf32>
    %114 = arith.mulf %113, %106 : vector<8x128xf32>
    %cst_42 = arith.constant 0.284496725 : f32
    %115 = vector.broadcast %cst_42 : f32 to vector<8x128xf32>
    %116 = arith.subf %114, %115 : vector<8x128xf32>
    %117 = arith.mulf %116, %106 : vector<8x128xf32>
    %cst_43 = arith.constant 0.254829586 : f32
    %118 = vector.broadcast %cst_43 : f32 to vector<8x128xf32>
    %119 = arith.addf %117, %118 : vector<8x128xf32>
    %120 = arith.mulf %119, %106 : vector<8x128xf32>
    %cst_44 = arith.constant 0.000000e+00 : f32
    %121 = vector.broadcast %cst_44 : f32 to vector<8x128xf32>
    %122 = arith.subf %121, %100 : vector<8x128xf32>
    %123 = arith.mulf %122, %100 : vector<8x128xf32>
    %124 = math.exp %123 : vector<8x128xf32>
    %125 = arith.mulf %120, %124 : vector<8x128xf32>
    %cst_45 = arith.constant 1.000000e+00 : f32
    %126 = vector.broadcast %cst_45 : f32 to vector<8x128xf32>
    %127 = arith.subf %126, %125 : vector<8x128xf32>
    %cst_46 = arith.constant 0.000000e+00 : f32
    %128 = vector.broadcast %cst_46 : f32 to vector<8x128xf32>
    %129 = arith.cmpf oge, %99, %128 : vector<8x128xf32>
    %cst_47 = arith.constant 0.000000e+00 : f32
    %130 = vector.broadcast %cst_47 : f32 to vector<8x128xf32>
    %131 = arith.subf %130, %127 : vector<8x128xf32>
    %132 = arith.select %129, %127, %131 : vector<8x128xi1>, vector<8x128xf32>
    %cst_48 = arith.constant 1.000000e+00 : f32
    %133 = vector.broadcast %cst_48 : f32 to vector<8x128xf32>
    %134 = arith.addf %133, %132 : vector<8x128xf32>
    %135 = arith.mulf %97, %134 : vector<8x128xf32>
    %136 = arith.truncf %135 : vector<8x128xf32> to vector<8x128xbf16>
    %c256 = arith.constant 256 : index
    %c0_49 = arith.constant 0 : index
    %137 = vector.load %arg4[%c256, %c0_49] : memref<512x128xbf16, #tpu.memory_space<vmem>>, vector<128x128xbf16>
    %cst_50 = arith.constant dense<0.000000e+00> : vector<8x128xf32>
    %138 = tpu.matmul %136, %137, %cst_50 {dimension_numbers = #tpu.dot_dimension_numbers<[1], [0], [0], [1], [0, 0, 1, 1], [], []>} : vector<8x128xbf16>, vector<128x128xbf16>, vector<8x128xf32> -> vector<8x128xf32>
    %c7 = arith.constant 7 : index
    %c0_51 = arith.constant 0 : index
    %139 = vector.load %arg5[%c7, %c0_51] : memref<16x128xf32, #tpu.memory_space<vmem>>, vector<1x128xf32>
    %140 = vector.broadcast %139 : vector<1x128xf32> to vector<8x128xf32>
    %141 = arith.addf %138, %140 : vector<8x128xf32>
    %142 = arith.addf %89, %141 : vector<8x128xf32>
    %c8 = arith.constant 8 : index
    %c0_52 = arith.constant 0 : index
    %143 = vector.load %arg5[%c8, %c0_52] : memref<16x128xf32, #tpu.memory_space<vmem>>, vector<1x128xf32>
    %c9 = arith.constant 9 : index
    %c0_53 = arith.constant 0 : index
    %144 = vector.load %arg5[%c9, %c0_53] : memref<16x128xf32, #tpu.memory_space<vmem>>, vector<1x128xf32>
    %cst_54 = arith.constant dense<0.000000e+00> : vector<8xf32>
    %145 = vector.multi_reduction <add>, %142, %cst_54 [1] : vector<8x128xf32> to vector<8xf32>
    %146 = vector.shape_cast %145 : vector<8xf32> to vector<8x1xf32>
    %cst_55 = arith.constant 3.125000e-02 : f32
    %147 = vector.broadcast %cst_55 : f32 to vector<8x1xf32>
    %148 = arith.mulf %146, %147 : vector<8x1xf32>
    %149 = vector.broadcast %148 : vector<8x1xf32> to vector<8x128xf32>
    %150 = arith.subf %142, %149 : vector<8x128xf32>
    %151 = vector.broadcast %17 : vector<1x128xf32> to vector<8x128xf32>
    %152 = arith.mulf %150, %151 : vector<8x128xf32>
    %153 = arith.mulf %152, %152 : vector<8x128xf32>
    %cst_56 = arith.constant dense<0.000000e+00> : vector<8xf32>
    %154 = vector.multi_reduction <add>, %153, %cst_56 [1] : vector<8x128xf32> to vector<8xf32>
    %155 = vector.shape_cast %154 : vector<8xf32> to vector<8x1xf32>
    %cst_57 = arith.constant 3.125000e-02 : f32
    %156 = vector.broadcast %cst_57 : f32 to vector<8x1xf32>
    %157 = arith.mulf %155, %156 : vector<8x1xf32>
    %cst_58 = arith.constant 9.99999974E-6 : f32
    %158 = vector.broadcast %cst_58 : f32 to vector<8x1xf32>
    %159 = arith.addf %157, %158 : vector<8x1xf32>
    %160 = math.rsqrt %159 : vector<8x1xf32>
    %161 = vector.broadcast %160 : vector<8x1xf32> to vector<8x128xf32>
    %162 = arith.mulf %152, %161 : vector<8x128xf32>
    %163 = vector.broadcast %143 : vector<1x128xf32> to vector<8x128xf32>
    %164 = arith.mulf %162, %163 : vector<8x128xf32>
    %165 = vector.broadcast %144 : vector<1x128xf32> to vector<8x128xf32>
    %166 = arith.addf %164, %165 : vector<8x128xf32>
    %c10 = arith.constant 10 : index
    %c0_59 = arith.constant 0 : index
    %167 = vector.load %arg5[%c10, %c0_59] : memref<16x128xf32, #tpu.memory_space<vmem>>, vector<1x128xf32>
    %c11 = arith.constant 11 : index
    %c0_60 = arith.constant 0 : index
    %168 = vector.load %arg5[%c11, %c0_60] : memref<16x128xf32, #tpu.memory_space<vmem>>, vector<1x128xf32>
    %cst_61 = arith.constant dense<0.000000e+00> : vector<8xf32>
    %169 = vector.multi_reduction <add>, %166, %cst_61 [1] : vector<8x128xf32> to vector<8xf32>
    %170 = vector.shape_cast %169 : vector<8xf32> to vector<8x1xf32>
    %cst_62 = arith.constant 3.125000e-02 : f32
    %171 = vector.broadcast %cst_62 : f32 to vector<8x1xf32>
    %172 = arith.mulf %170, %171 : vector<8x1xf32>
    %173 = vector.broadcast %172 : vector<8x1xf32> to vector<8x128xf32>
    %174 = arith.subf %166, %173 : vector<8x128xf32>
    %175 = vector.broadcast %17 : vector<1x128xf32> to vector<8x128xf32>
    %176 = arith.mulf %174, %175 : vector<8x128xf32>
    %177 = arith.mulf %176, %176 : vector<8x128xf32>
    %cst_63 = arith.constant dense<0.000000e+00> : vector<8xf32>
    %178 = vector.multi_reduction <add>, %177, %cst_63 [1] : vector<8x128xf32> to vector<8xf32>
    %179 = vector.shape_cast %178 : vector<8xf32> to vector<8x1xf32>
    %cst_64 = arith.constant 3.125000e-02 : f32
    %180 = vector.broadcast %cst_64 : f32 to vector<8x1xf32>
    %181 = arith.mulf %179, %180 : vector<8x1xf32>
    %cst_65 = arith.constant 9.99999974E-6 : f32
    %182 = vector.broadcast %cst_65 : f32 to vector<8x1xf32>
    %183 = arith.addf %181, %182 : vector<8x1xf32>
    %184 = math.rsqrt %183 : vector<8x1xf32>
    %185 = vector.broadcast %184 : vector<8x1xf32> to vector<8x128xf32>
    %186 = arith.mulf %176, %185 : vector<8x128xf32>
    %187 = vector.broadcast %167 : vector<1x128xf32> to vector<8x128xf32>
    %188 = arith.mulf %186, %187 : vector<8x128xf32>
    %189 = vector.broadcast %168 : vector<1x128xf32> to vector<8x128xf32>
    %190 = arith.addf %188, %189 : vector<8x128xf32>
    %191 = arith.truncf %190 : vector<8x128xf32> to vector<8x128xbf16>
    %c384 = arith.constant 384 : index
    %c0_66 = arith.constant 0 : index
    %192 = vector.load %arg4[%c384, %c0_66] : memref<512x128xbf16, #tpu.memory_space<vmem>>, vector<128x128xbf16>
    %cst_67 = arith.constant dense<0.000000e+00> : vector<8x128xf32>
    %193 = tpu.matmul %191, %192, %cst_67 {dimension_numbers = #tpu.dot_dimension_numbers<[1], [0], [0], [1], [0, 0, 1, 1], [], []>} : vector<8x128xbf16>, vector<128x128xbf16>, vector<8x128xf32> -> vector<8x128xf32>
    %c12 = arith.constant 12 : index
    %c0_68 = arith.constant 0 : index
    %194 = vector.load %arg5[%c12, %c0_68] : memref<16x128xf32, #tpu.memory_space<vmem>>, vector<1x128xf32>
    %195 = vector.broadcast %194 : vector<1x128xf32> to vector<8x128xf32>
    %196 = arith.addf %193, %195 : vector<8x128xf32>
    %c0_69 = arith.constant 0 : index
    %c0_70 = arith.constant 0 : index
    %197 = vector.load %arg6[%c0_69, %c0_70] : memref<8x128xf32, #tpu.memory_space<vmem>>, vector<8x128xf32>
    tpu.vector_store %arg6[%c0_69, %c0_70], %196 {strides = array<i32>} : memref<8x128xf32, #tpu.memory_space<vmem>>, vector<8x128xf32>,
    return
  }
}

</mosaic_0001>

<llo_original>
// kernel: single_classifier_forward.1
$region0: #{single_classifier_forward.1}
  #allocation0 [shape = 'u32[]', space=smem, size = 0x4, offset = 0x4, fixed_abs, tag = 'smem constant byte address 0x4 - core index']
  #allocation1 [shape = 'u32[144,128]{1,0:T(1,128)}', space=vmem, size = 0x12000, scoped, tag = 'internal scratch']
  %s0 = inlined_call_operand.vmem [shape: s32[16,1], index: 0, kind: input, shape index: {}]
  %s1 = inlined_call_operand.hbm [shape: bf16[128,128], index: 1, kind: input, shape index: {}]
  %s2 = inlined_call_operand.vmem [shape: f32[16,128], index: 2, kind: input, shape index: {}]
  %s3 = inlined_call_operand.hbm [shape: bf16[128,384], index: 3, kind: input, shape index: {}]
  %s4 = inlined_call_operand.hbm [shape: bf16[512,128], index: 4, kind: input, shape index: {}]
  %s5 = inlined_call_operand.vmem [shape: f32[16,128], index: 5, kind: input, shape index: {}]
  %s6 = inlined_call_operand.vmem [shape: f32[8,128], index: 6, kind: output, shape index: {}]
  %s7 = sld [smem:[#allocation0]]
  $region46: #{single_classifier_forward.1} parent=0
    _
  %s9 = ssub.s32 1, %s7
  %s10 = scalar_select 0, %s9, %s7
  $region1: #{single_classifier_forward.1} parent=0
    #allocation2 [shape = 'u8[32768]{0}', space=vmem, size = 0x8000, scoped, tag = 'input window, operand 1, single buffered']
    #allocation3 [shape = 's32[1]{0}', space=sflag, size = 0x4, scoped, tag = 'scoped memory for single_classifier_forward.1']
    #allocation4 [shape = 'u8[98304]{0}', space=vmem, size = 0x18000, scoped, tag = 'input window, operand 3, single buffered']
    #allocation5 [shape = 's32[1]{0}', space=sflag, size = 0x4, scoped, tag = 'scoped memory for single_classifier_forward.1']
    #allocation6 [shape = 'u8[131072]{0}', space=vmem, size = 0x20000, scoped, tag = 'input window, operand 4, single buffered']
    %11 = vsyncpa [#allocation3], 0
    %12 = vsyncpa [#allocation5], 0
    // Predicated region
    $region2: #{single_classifier_forward.1} parent=1 // pred_check
      _
    $region3: #{single_classifier_forward.1} parent=1 // pred_check_branch
      %14 = sbr.rel (0) target = $region5
    $region4: #{single_classifier_forward.1} parent=1 // pred_region
      _
    $region5: #{single_classifier_forward.1} parent=1 // pred_fallthru
      _
    // Predicated region
    $region6: #{single_classifier_forward.1} parent=1 // pred_check
      _
    $region7: #{single_classifier_forward.1} parent=1 // pred_check_branch
      %16 = sbr.rel (0) target = $region9
    $region8: #{single_classifier_forward.1} parent=1 // pred_region
      %s18 = ssub.s32 1024, 1024
      %19 = vsyncadd [#allocation3], %s18
      %s20 = sshll.u32 [#allocation2], 4
      %s21 = int_to_ptr.vmem [resolvable:$true] %s20
      %26 = dma.hbm_to_vmem [thread:$0]  %s1, 1024, %s21, [#allocation3], 64, 64, 4
    $region9: #{single_classifier_forward.1} parent=1 // pred_fallthru
      _
    // Predicated region
    $region10: #{single_classifier_forward.1} parent=1 // pred_check
      _
    $region11: #{single_classifier_forward.1} parent=1 // pred_check_branch
      %28 = sbr.rel (0) target = $region13
    $region12: #{single_classifier_forward.1} parent=1 // pred_region
      _
    $region13: #{single_classifier_forward.1} parent=1 // pred_fallthru
      _
    // Predicated region
    $region14: #{single_classifier_forward.1} parent=1 // pred_check
      _
    $region15: #{single_classifier_forward.1} parent=1 // pred_check_branch
      %30 = sbr.rel (0) target = $region17
    $region16: #{single_classifier_forward.1} parent=1 // pred_region
      %s32 = ssub.s32 3072, 3072
      %33 = vsyncadd [#allocation5], %s32
      %s34 = sshll.u32 [#allocation4], 4
      %s35 = int_to_ptr.vmem [resolvable:$true] %s34
      %40 = dma.hbm_to_vmem [thread:$0]  %s3, 3072, %s35, [#allocation5], 192, 192, 12
    $region17: #{single_classifier_forward.1} parent=1 // pred_fallthru
      _
    // Predicated region
    $region18: #{single_classifier_forward.1} parent=1 // pred_check
      _
    $region19: #{single_classifier_forward.1} parent=1 // pred_check_branch
      %42 = sbr.rel (0) target = $region21
    $region20: #{single_classifier_forward.1} parent=1 // pred_region
      %s44 = ssub.s32 4096, 4096
      %45 = vsyncadd [#allocation5], %s44
      %s46 = sshll.u32 [#allocation6], 4
      %s47 = int_to_ptr.vmem [resolvable:$true] %s46
      %52 = dma.hbm_to_vmem [thread:$0]  %s4, 4096, %s47, [#allocation5], 64, 64, 4
    $region21: #{single_classifier_forward.1} parent=1 // pred_fallthru
      _
    // Predicated region
    $region22: #{single_classifier_forward.1} parent=1 // pred_check
      _
    $region23: #{single_classifier_forward.1} parent=1 // pred_check_branch
      %54 = sbr.rel (0) target = $region25
    $region24: #{single_classifier_forward.1} parent=1 // pred_region
      _
    $region25: #{single_classifier_forward.1} parent=1 // pred_fallthru
      _
    // Predicated region
    $region26: #{single_classifier_forward.1} parent=1 // pred_check
      _
    $region27: #{single_classifier_forward.1} parent=1 // pred_check_branch
      %56 = sbr.rel (0) target = $region29
    $region28: #{single_classifier_forward.1} parent=1 // pred_region
      %57 = dma.done [#allocation3], 1024
    $region29: #{single_classifier_forward.1} parent=1 // pred_fallthru
      _
    // Predicated region
    $region30: #{single_classifier_forward.1} parent=1 // pred_check
      _
    $region31: #{single_classifier_forward.1} parent=1 // pred_check_branch
      %59 = sbr.rel (0) target = $region33
    $region32: #{single_classifier_forward.1} parent=1 // pred_region
      %60 = dma.done [#allocation5], 3072
    $region33: #{single_classifier_forward.1} parent=1 // pred_fallthru
      _
    // Predicated region
    $region34: #{single_classifier_forward.1} parent=1 // pred_check
      _
    $region35: #{single_classifier_forward.1} parent=1 // pred_check_branch
      %62 = sbr.rel (0) target = $region37
    $region36: #{single_classifier_forward.1} parent=1 // pred_region
      %63 = dma.done [#allocation5], 4096
    $region37: #{single_classifier_forward.1} parent=1 // pred_fallthru
      _
    %v65 = vld [vmem:[%s0] sm:$0xff]
    %v66 = vld [vmem:[%s0 + $0x8] sm:$0xff]
    %v67 = vlaneseq
    %v68 = vand.u32 %v67, 127
    %69 = vset.pattern.permute.xlu0 0
    %70 = vperm.xlu0 %69, %v65
    %v71 = vpop.permute.xlu0 %70
    %72 = vset.pattern.permute.xlu0 0
    %73 = vperm.xlu0 %72, %v66
    %v74 = vpop.permute.xlu0 %73
    %vm75 = vcmp.eq.s32.totalorder %v71, %v68
    %vm76 = vcmp.eq.s32.totalorder %v74, %v68
    %v77 = vsel %vm75, 1.0, 0.0
    %v78 = vsel %vm76, 1.0, 0.0
    %v79 = vpack.c.bf16 %v78, %v77
    %v80 = vld [vmem:[#allocation2] sm:$0xf]
    %v81 = vld [vmem:[#allocation2 + $0x4] sm:$0xf]
    %v82 = vld [vmem:[#allocation2 + $0x8] sm:$0xf]
    %v83 = vld [vmem:[#allocation2 + $0xc] sm:$0xf]
    %v84 = vld [vmem:[#allocation2 + $0x10] sm:$0xf]
    %v85 = vld [vmem:[#allocation2 + $0x14] sm:$0xf]
    %v86 = vld [vmem:[#allocation2 + $0x18] sm:$0xf]
    %v87 = vld [vmem:[#allocation2 + $0x1c] sm:$0xf]
    %v88 = vld [vmem:[#allocation2 + $0x20] sm:$0xf]
    %v89 = vld [vmem:[#allocation2 + $0x24] sm:$0xf]
    %v90 = vld [vmem:[#allocation2 + $0x28] sm:$0xf]
    %v91 = vld [vmem:[#allocation2 + $0x2c] sm:$0xf]
    %v92 = vld [vmem:[#allocation2 + $0x30] sm:$0xf]
    %v93 = vld [vmem:[#allocation2 + $0x34] sm:$0xf]
    %v94 = vld [vmem:[#allocation2 + $0x38] sm:$0xf]
    %v95 = vld [vmem:[#allocation2 + $0x3c] sm:$0xf]
    %v96 = vld [vmem:[%s2] sm:$0xff]
    %v97 = vld [vmem:[%s2 + $0x8] sm:$0xff]
    %v114 = vunpack.c.l.b16 %v80
    %v115 = vunpack.c.l.b16 %v81
    %v116 = vunpack.c.l.b16 %v82
    %v117 = vunpack.c.l.b16 %v83
    %v118 = vunpack.c.l.b16 %v84
    %v119 = vunpack.c.l.b16 %v85
    %v120 = vunpack.c.l.b16 %v86
    %v121 = vunpack.c.l.b16 %v87
    %v122 = vunpack.c.l.b16 %v88
    %v123 = vunpack.c.l.b16 %v89
    %v124 = vunpack.c.l.b16 %v90
    %v125 = vunpack.c.l.b16 %v91
    %v126 = vunpack.c.l.b16 %v92
    %v127 = vunpack.c.l.b16 %v93
    %v128 = vunpack.c.l.b16 %v94
    %v129 = vunpack.c.l.b16 %v95
    %v130 = vpack.c.b16 %v115, %v114
    %v131 = vpack.c.b16 %v117, %v116
    %v132 = vpack.c.b16 %v119, %v118
    %v133 = vpack.c.b16 %v121, %v120
    %v134 = vpack.c.b16 %v123, %v122
    %v135 = vpack.c.b16 %v125, %v124
    %v136 = vpack.c.b16 %v127, %v126
    %v137 = vpack.c.b16 %v129, %v128
    %146 = vmatprep.subr.bf16.mxu0 0
    %147 = vmatpush1.bf16.msra.mxu0 %v130
    %148 = vmatprep.subr.bf16.mxu0 0
    %149 = vmatpush1.bf16.msra.mxu0 %v131
    %150 = vmatprep.subr.bf16.mxu0 0
    %151 = vmatpush1.bf16.msra.mxu0 %v132
    %152 = vmatprep.subr.bf16.mxu0 0
    %153 = vmatpush1.bf16.msra.mxu0 %v133
    %154 = vmatprep.subr.bf16.mxu0 0
    %155 = vmatpush1.bf16.msra.mxu0 %v134
    %156 = vmatprep.subr.bf16.mxu0 0
    %157 = vmatpush1.bf16.msra.mxu0 %v135
    %158 = vmatprep.subr.bf16.mxu0 0
    %159 = vmatpush1.bf16.msra.mxu0 %v136
    %160 = vmatprep.subr.bf16.mxu0 0
    %161 = vmatpush1.bf16.msra.mxu0 %v137
    %162 = vmatprep.subr.bf16.mxu0 0
    %163 = vmatpush1.bf16.msra.mxu0 0
    %164 = vmatprep.subr.bf16.mxu0 0
    %165 = vmatpush1.bf16.msra.mxu0 0
    %166 = vmatprep.subr.bf16.mxu0 0
    %167 = vmatpush1.bf16.msra.mxu0 0
    %168 = vmatprep.subr.bf16.mxu0 0
    %169 = vmatpush1.bf16.msra.mxu0 0
    %170 = vmatprep.subr.bf16.mxu0 0
    %171 = vmatpush1.bf16.msra.mxu0 0
    %172 = vmatprep.subr.bf16.mxu0 0
    %173 = vmatpush1.bf16.msra.mxu0 0
    %174 = vmatprep.subr.bf16.mxu0 0
    %175 = vmatpush1.bf16.msra.mxu0 0
    %176 = vmatprep.subr.bf16.mxu0 0
    %177 = vmatpush1.bf16.msra.mxu0 0
    %178 = vmatprep.mubr.bf16.mxu0 0
    %179 = vmatmul.mubr.bf16.gmra.mrb[0].mxu0 %v79
    %v180 = vpop.f32.mrb[0].mxu0
    %v181 = vadd.f32 %v96, %v180
    %v182 = vpop.f32.mrb[0].mxu0
    %v183 = vpop.f32.mrb[0].mxu0
    %v184 = vadd.f32 %v97, %v183
    %v185 = vpop.f32.mrb[0].mxu0
    %186 = vdwg.mxu0
    %v187 = vpack.c.bf16 %v184, %v181
    %vm188 = vcmp.lt.s32.totalorder %v68, 32
    %v189 = vsel %vm188, 1, 0
    %v190 = vcvt.s32.f32 %v189
    %v191 = vld [vmem:[#allocation4] sm:$0xff]
    %v192 = vld [vmem:[#allocation4 + $0x8] sm:$0xf]
    %v193 = vld [vmem:[#allocation4 + $0xc] sm:$0xff]
    %v194 = vld [vmem:[#allocation4 + $0x14] sm:$0xf]
    %v195 = vld [vmem:[#allocation4 + $0x18] sm:$0xff]
    %v196 = vld [vmem:[#allocation4 + $0x20] sm:$0xf]
    %v197 = vld [vmem:[#allocation4 + $0x24] sm:$0xff]
    %v198 = vld [vmem:[#allocation4 + $0x2c] sm:$0xf]
    %v199 = vld [vmem:[#allocation4 + $0x30] sm:$0xff]
    %v200 = vld [vmem:[#allocation4 + $0x38] sm:$0xf]
    %v201 = vld [vmem:[#allocation4 + $0x3c] sm:$0xff]
    %v202 = vld [vmem:[#allocation4 + $0x44] sm:$0xf]
    %v203 = vld [vmem:[#allocation4 + $0x48] sm:$0xff]
    %v204 = vld [vmem:[#allocation4 + $0x50] sm:$0xf]
    %v205 = vld [vmem:[#allocation4 + $0x54] sm:$0xff]
    %v206 = vld [vmem:[#allocation4 + $0x5c] sm:$0xf]
    %v207 = vld [vmem:[#allocation4 + $0x60] sm:$0xff]
    %v208 = vld [vmem:[#allocation4 + $0x68] sm:$0xf]
    %v209 = vld [vmem:[#allocation4 + $0x6c] sm:$0xff]
    %v210 = vld [vmem:[#allocation4 + $0x74] sm:$0xf]
    %v211 = vld [vmem:[#allocation4 + $0x78] sm:$0xff]
    %v212 = vld [vmem:[#allocation4 + $0x80] sm:$0xf]
    %v213 = vld [vmem:[#allocation4 + $0x84] sm:$0xff]
    %v214 = vld [vmem:[#allocation4 + $0x8c] sm:$0xf]
    %v215 = vld [vmem:[#allocation4 + $0x90] sm:$0xff]
    %v216 = vld [vmem:[#allocation4 + $0x98] sm:$0xf]
    %v217 = vld [vmem:[#allocation4 + $0x9c] sm:$0xff]
    %v218 = vld [vmem:[#allocation4 + $0xa4] sm:$0xf]
    %v219 = vld [vmem:[#allocation4 + $0xa8] sm:$0xff]
    %v220 = vld [vmem:[#allocation4 + $0xb0] sm:$0xf]
    %v221 = vld [vmem:[#allocation4 + $0xb4] sm:$0xff]
    %v222 = vld [vmem:[#allocation4 + $0xbc] sm:$0xf]
    %v255 = vunpack.c.l.b16 %v191
    %v256 = vunpack.c.h.b16 %v191
    %v257 = vunpack.c.l.b16 %v192
    %v258 = vunpack.c.l.b16 %v193
    %v259 = vunpack.c.h.b16 %v193
    %v260 = vunpack.c.l.b16 %v194
    %v261 = vunpack.c.l.b16 %v195
    %v262 = vunpack.c.h.b16 %v195
    %v263 = vunpack.c.l.b16 %v196
    %v264 = vunpack.c.l.b16 %v197
    %v265 = vunpack.c.h.b16 %v197
    %v266 = vunpack.c.l.b16 %v198
    %v267 = vunpack.c.l.b16 %v199
    %v268 = vunpack.c.h.b16 %v199
    %v269 = vunpack.c.l.b16 %v200
    %v270 = vunpack.c.l.b16 %v201
    %v271 = vunpack.c.h.b16 %v201
    %v272 = vunpack.c.l.b16 %v202
    %v273 = vunpack.c.l.b16 %v203
    %v274 = vunpack.c.h.b16 %v203
    %v275 = vunpack.c.l.b16 %v204
    %v276 = vunpack.c.l.b16 %v205
    %v277 = vunpack.c.h.b16 %v205
    %v278 = vunpack.c.l.b16 %v206
    %v279 = vunpack.c.l.b16 %v207
    %v280 = vunpack.c.h.b16 %v207
    %v281 = vunpack.c.l.b16 %v208
    %v282 = vunpack.c.l.b16 %v209
    %v283 = vunpack.c.h.b16 %v209
    %v284 = vunpack.c.l.b16 %v210
    %v285 = vunpack.c.l.b16 %v211
    %v286 = vunpack.c.h.b16 %v211
    %v287 = vunpack.c.l.b16 %v212
    %v288 = vunpack.c.l.b16 %v213
    %v289 = vunpack.c.h.b16 %v213
    %v290 = vunpack.c.l.b16 %v214
    %v291 = vunpack.c.l.b16 %v215
    %v292 = vunpack.c.h.b16 %v215
    %v293 = vunpack.c.l.b16 %v216
    %v294 = vunpack.c.l.b16 %v217
    %v295 = vunpack.c.h.b16 %v217
    %v296 = vunpack.c.l.b16 %v218
    %v297 = vunpack.c.l.b16 %v219
    %v298 = vunpack.c.h.b16 %v219
    %v299 = vunpack.c.l.b16 %v220
    %v300 = vunpack.c.l.b16 %v221
    %v301 = vunpack.c.h.b16 %v221
    %v302 = vunpack.c.l.b16 %v222
    %v303 = vpack.c.b16 %v258, %v255
    %v304 = vpack.c.b16 %v259, %v256
    %v305 = vpack.c.b16 %v260, %v257
    %v306 = vpack.c.b16 %v264, %v261
    %v307 = vpack.c.b16 %v265, %v262
    %v308 = vpack.c.b16 %v266, %v263
    %v309 = vpack.c.b16 %v270, %v267
    %v310 = vpack.c.b16 %v271, %v268
    %v311 = vpack.c.b16 %v272, %v269
    %v312 = vpack.c.b16 %v276, %v273
    %v313 = vpack.c.b16 %v277, %v274
    %v314 = vpack.c.b16 %v278, %v275
    %v315 = vpack.c.b16 %v282, %v279
    %v316 = vpack.c.b16 %v283, %v280
    %v317 = vpack.c.b16 %v284, %v281
    %v318 = vpack.c.b16 %v288, %v285
    %v319 = vpack.c.b16 %v289, %v286
    %v320 = vpack.c.b16 %v290, %v287
    %v321 = vpack.c.b16 %v294, %v291
    %v322 = vpack.c.b16 %v295, %v292
    %v323 = vpack.c.b16 %v296, %v293
    %v324 = vpack.c.b16 %v300, %v297
    %v325 = vpack.c.b16 %v301, %v298
    %v326 = vpack.c.b16 %v302, %v299
    %351 = vmatprep.subr.bf16.mxu0 %v304
    %352 = vmatpush1.bf16.msra.mxu0 %v303
    %353 = vmatprep.subr.bf16.mxu0 %v307
    %354 = vmatpush1.bf16.msra.mxu0 %v306
    %355 = vmatprep.subr.bf16.mxu0 %v310
    %356 = vmatpush1.bf16.msra.mxu0 %v309
    %357 = vmatprep.subr.bf16.mxu0 %v313
    %358 = vmatpush1.bf16.msra.mxu0 %v312
    %359 = vmatprep.subr.bf16.mxu0 %v316
    %360 = vmatpush1.bf16.msra.mxu0 %v315
    %361 = vmatprep.subr.bf16.mxu0 %v319
    %362 = vmatpush1.bf16.msra.mxu0 %v318
    %363 = vmatprep.subr.bf16.mxu0 %v322
    %364 = vmatpush1.bf16.msra.mxu0 %v321
    %365 = vmatprep.subr.bf16.mxu0 %v325
    %366 = vmatpush1.bf16.msra.mxu0 %v324
    %367 = vmatprep.subr.bf16.mxu0 0
    %368 = vmatpush1.bf16.msra.mxu0 0
    %369 = vmatprep.subr.bf16.mxu0 0
    %370 = vmatpush1.bf16.msra.mxu0 0
    %371 = vmatprep.subr.bf16.mxu0 0
    %372 = vmatpush1.bf16.msra.mxu0 0
    %373 = vmatprep.subr.bf16.mxu0 0
    %374 = vmatpush1.bf16.msra.mxu0 0
    %375 = vmatprep.subr.bf16.mxu0 0
    %376 = vmatpush1.bf16.msra.mxu0 0
    %377 = vmatprep.subr.bf16.mxu0 0
    %378 = vmatpush1.bf16.msra.mxu0 0
    %379 = vmatprep.subr.bf16.mxu0 0
    %380 = vmatpush1.bf16.msra.mxu0 0
    %381 = vmatprep.subr.bf16.mxu0 0
    %382 = vmatpush1.bf16.msra.mxu0 0
    %383 = vmatprep.mubr.bf16.mxu0 0
    %384 = vmatmul.mubr.bf16.gmra.mrb[0].mxu0 %v187
    %v385 = vpop.f32.mrb[0].mxu0
    %v386 = vadd.f32 0.0, %v385
    %v387 = vpop.f32.mrb[0].mxu0
    %v388 = vadd.f32 0.0, %v387
    %v389 = vpop.f32.mrb[0].mxu0
    %v390 = vpop.f32.mrb[0].mxu0
    %v391 = vadd.f32 0.0, %v390
    %392 = vdwg.mxu0
    %393 = vmatprep.subr.bf16.mxu0 0
    %394 = vmatpush1.bf16.msra.mxu0 %v305
    %395 = vmatprep.subr.bf16.mxu0 0
    %396 = vmatpush1.bf16.msra.mxu0 %v308
    %397 = vmatprep.subr.bf16.mxu0 0
    %398 = vmatpush1.bf16.msra.mxu0 %v311
    %399 = vmatprep.subr.bf16.mxu0 0
    %400 = vmatpush1.bf16.msra.mxu0 %v314
    %401 = vmatprep.subr.bf16.mxu0 0
    %402 = vmatpush1.bf16.msra.mxu0 %v317
    %403 = vmatprep.subr.bf16.mxu0 0
    %404 = vmatpush1.bf16.msra.mxu0 %v320
    %405 = vmatprep.subr.bf16.mxu0 0
    %406 = vmatpush1.bf16.msra.mxu0 %v323
    %407 = vmatprep.subr.bf16.mxu0 0
    %408 = vmatpush1.bf16.msra.mxu0 %v326
    %409 = vmatprep.subr.bf16.mxu0 0
    %410 = vmatpush1.bf16.msra.mxu0 0
    %411 = vmatprep.subr.bf16.mxu0 0
    %412 = vmatpush1.bf16.msra.mxu0 0
    %413 = vmatprep.subr.bf16.mxu0 0
    %414 = vmatpush1.bf16.msra.mxu0 0
    %415 = vmatprep.subr.bf16.mxu0 0
    %416 = vmatpush1.bf16.msra.mxu0 0
    %417 = vmatprep.subr.bf16.mxu0 0
    %418 = vmatpush1.bf16.msra.mxu0 0
    %419 = vmatprep.subr.bf16.mxu0 0
    %420 = vmatpush1.bf16.msra.mxu0 0
    %421 = vmatprep.subr.bf16.mxu0 0
    %422 = vmatpush1.bf16.msra.mxu0 0
    %423 = vmatprep.subr.bf16.mxu0 0
    %424 = vmatpush1.bf16.msra.mxu0 0
    %425 = vmatprep.mubr.bf16.mxu0 0
    %426 = vmatmul.mubr.bf16.gmra.mrb[0].mxu0 %v187
    %v427 = vpop.f32.mrb[0].mxu0
    %v428 = vadd.f32 0.0, %v427
    %v429 = vpop.f32.mrb[0].mxu0
    %v430 = vpop.f32.mrb[0].mxu0
    %v431 = vadd.f32 0.0, %v430
    %v432 = vpop.f32.mrb[0].mxu0
    %433 = vdwg.mxu0
    %v434 = vld [vmem:[%s5] sm:$0x1]
    %v435 = vlaneseq
    %v436 = vshrl.u32 %v435, 7
    %v437 = vsub.s32 0, %v436
    %v438 = vrot.slane %v434, %v437
    %v439 = vadd.f32 %v386, %v438
    %v440 = vld [vmem:[%s5 + $0x1] sm:$0x1]
    %v441 = vlaneseq
    %v442 = vshrl.u32 %v441, 7
    %v443 = vsub.s32 0, %v442
    %v444 = vrot.slane %v440, %v443
    %v445 = vadd.f32 %v388, %v444
    %v446 = vadd.f32 %v391, %v444
    %v447 = vld [vmem:[%s5 + $0x2] sm:$0x1]
    %v448 = vlaneseq
    %v449 = vshrl.u32 %v448, 7
    %v450 = vsub.s32 0, %v449
    %v451 = vrot.slane %v447, %v450
    %v452 = vadd.f32 %v428, %v451
    %v453 = vadd.f32 %v431, %v451
    %454 = vmatprep.subr.mxu0 0.0
    %455 = vmatpush1.xpose.msra.mxu0 %v445
    %456 = vmatprep.subr.mxu0 0.0
    %457 = vmatpush1.xpose.msra.mxu0 %v446
    %458 = vmatprep.subr.mxu0 0.0
    %459 = vmatpush1.xpose.msra.mxu0 0.0
    %460 = vmatprep.subr.mxu0 0.0
    %461 = vmatpush1.xpose.msra.mxu0 0.0
    %462 = vmatprep.subr.mxu0 0.0
    %463 = vmatpush1.xpose.msra.mxu0 0.0
    %464 = vmatprep.subr.mxu0 0.0
    %465 = vmatpush1.xpose.msra.mxu0 0.0
    %466 = vmatprep.subr.mxu0 0.0
    %467 = vmatpush1.xpose.msra.mxu0 0.0
    %468 = vmatprep.subr.mxu0 0.0
    %469 = vmatpush1.xpose.msra.mxu0 0.0
    %470 = vmatprep.subr.mxu0 0.0
    %471 = vmatpush1.xpose.msra.mxu0 0.0
    %472 = vmatprep.subr.mxu0 0.0
    %473 = vmatpush1.xpose.msra.mxu0 0.0
    %474 = vmatprep.subr.mxu0 0.0
    %475 = vmatpush1.xpose.msra.mxu0 0.0
    %476 = vmatprep.subr.mxu0 0.0
    %477 = vmatpush1.xpose.msra.mxu0 0.0
    %478 = vmatprep.subr.mxu0 0.0
    %479 = vmatpush1.xpose.msra.mxu0 0.0
    %480 = vmatprep.subr.mxu0 0.0
    %481 = vmatpush1.xpose.msra.mxu0 0.0
    %482 = vmatprep.subr.mxu0 0.0
    %483 = vmatpush1.xpose.msra.mxu0 0.0
    %484 = vmatprep.subr.mxu0 0.0
    %485 = vmatpush1.xpose.msra.mxu0 0.0
    %486 = vmatprep.subr.mxu0 0.0
    %487 = vmatpush1.xpose.msra.mxu0 0.0
    %488 = vmatprep.subr.mxu0 0.0
    %489 = vmatpush1.xpose.msra.mxu0 0.0
    %490 = vmatprep.subr.mxu0 0.0
    %491 = vmatpush1.xpose.msra.mxu0 0.0
    %492 = vmatprep.subr.mxu0 0.0
    %493 = vmatpush1.xpose.msra.mxu0 0.0
    %494 = vmatprep.subr.mxu0 0.0
    %495 = vmatpush1.xpose.msra.mxu0 0.0
    %496 = vmatprep.subr.mxu0 0.0
    %497 = vmatpush1.xpose.msra.mxu0 0.0
    %498 = vmatprep.subr.mxu0 0.0
    %499 = vmatpush1.xpose.msra.mxu0 0.0
    %500 = vmatprep.subr.mxu0 0.0
    %501 = vmatpush1.xpose.msra.mxu0 0.0
    %502 = vmatprep.subr.mxu0 0.0
    %503 = vmatpush1.xpose.msra.mxu0 0.0
    %504 = vmatprep.subr.mxu0 0.0
    %505 = vmatpush1.xpose.msra.mxu0 0.0
    %506 = vmatprep.subr.mxu0 0.0
    %507 = vmatpush1.xpose.msra.mxu0 0.0
    %508 = vmatprep.subr.mxu0 0.0
    %509 = vmatpush1.xpose.msra.mxu0 0.0
    %510 = vmatprep.subr.mxu0 0.0
    %511 = vmatpush1.xpose.msra.mxu0 0.0
    %512 = vmatprep.subr.mxu0 0.0
    %513 = vmatpush1.xpose.msra.mxu0 0.0
    %514 = vmatprep.subr.mxu0 0.0
    %515 = vmatpush1.xpose.msra.mxu0 0.0
    %516 = vmatprep.subr.mxu0 0.0
    %517 = vmatpush1.xpose.msra.mxu0 0.0
    %518 = vmatprep.mubr.f32.mxu0 0.0
    %519 = vmatmul.mubr.f32.gmra.mrb[0].mxu0 %v439
    %v520 = vpop.f32.mrb[0].mxu0
    %v521 = vadd.f32 0.0, %v520
    %v522 = vpop.f32.mrb[0].mxu0
    %523 = vdwg.mxu0
    %v524 = vmul.f32 %v521, 0.17677669
    %v525 = vlaneseq
    %v526 = vshrl.u32 %v525, 7
    %vm527 = vcmp.ge.s32.totalorder %v68, 9
    %v528 = vsel %vm527, 1, 0
    %vm529 = vcmp.lt.s32.totalorder %v68, 2
    %v530 = vsel %vm529, %v68, %v528
    %vm531 = vcmp.eq.s32.totalorder %v530, %v526
    %v532 = vsel %vm531, %v524, -1e+30
    %vm533 = vcmask 130048
    %v534 = vsel %vm533, %v532, -inf
    %535 = vmax.xlane.f32.xlu0 %v534
    %v536 = vpop.xlane.xlu0 %535
    %v537 = vsub.f32 %v532, %v536
    %v538 = vmul.f32 %v537, 1.442695
    %v539 = vpow.pop %v538
    %v540 = vsel %vm533, %v539, 0.0
    %541 = vadd.xlane.f32.xlu0 %v540
    %v542 = vpop.xlane.xlu0 %541
    %v543 = vrcp.pop %v542
    %v544 = vmul.f32 %v539, %v543
    %v546 = vsel %vm533, %v544, 0
    %548 = vmatprep.subr.mxu0 0.0
    %549 = vmatpush1.msra.mxu0 %v452
    %550 = vmatprep.subr.mxu0 0.0
    %551 = vmatpush1.msra.mxu0 %v453
    %552 = vmatprep.subr.mxu0 0.0
    %553 = vmatpush1.msra.mxu0 0.0
    %554 = vmatprep.subr.mxu0 0.0
    %555 = vmatpush1.msra.mxu0 0.0
    %556 = vmatprep.subr.mxu0 0.0
    %557 = vmatpush1.msra.mxu0 0.0
    %558 = vmatprep.subr.mxu0 0.0
    %559 = vmatpush1.msra.mxu0 0.0
    %560 = vmatprep.subr.mxu0 0.0
    %561 = vmatpush1.msra.mxu0 0.0
    %562 = vmatprep.subr.mxu0 0.0
    %563 = vmatpush1.msra.mxu0 0.0
    %564 = vmatprep.subr.mxu0 0.0
    %565 = vmatpush1.msra.mxu0 0.0
    %566 = vmatprep.subr.mxu0 0.0
    %567 = vmatpush1.msra.mxu0 0.0
    %568 = vmatprep.subr.mxu0 0.0
    %569 = vmatpush1.msra.mxu0 0.0
    %570 = vmatprep.subr.mxu0 0.0
    %571 = vmatpush1.msra.mxu0 0.0
    %572 = vmatprep.subr.mxu0 0.0
    %573 = vmatpush1.msra.mxu0 0.0
    %574 = vmatprep.subr.mxu0 0.0
    %575 = vmatpush1.msra.mxu0 0.0
    %576 = vmatprep.subr.mxu0 0.0
    %577 = vmatpush1.msra.mxu0 0.0
    %578 = vmatprep.subr.mxu0 0.0
    %579 = vmatpush1.msra.mxu0 0.0
    %580 = vmatprep.subr.mxu0 0.0
    %581 = vmatpush1.msra.mxu0 0.0
    %582 = vmatprep.subr.mxu0 0.0
    %583 = vmatpush1.msra.mxu0 0.0
    %584 = vmatprep.subr.mxu0 0.0
    %585 = vmatpush1.msra.mxu0 0.0
    %586 = vmatprep.subr.mxu0 0.0
    %587 = vmatpush1.msra.mxu0 0.0
    %588 = vmatprep.subr.mxu0 0.0
    %589 = vmatpush1.msra.mxu0 0.0
    %590 = vmatprep.subr.mxu0 0.0
    %591 = vmatpush1.msra.mxu0 0.0
    %592 = vmatprep.subr.mxu0 0.0
    %593 = vmatpush1.msra.mxu0 0.0
    %594 = vmatprep.subr.mxu0 0.0
    %595 = vmatpush1.msra.mxu0 0.0
    %596 = vmatprep.subr.mxu0 0.0
    %597 = vmatpush1.msra.mxu0 0.0
    %598 = vmatprep.subr.mxu0 0.0
    %599 = vmatpush1.msra.mxu0 0.0
    %600 = vmatprep.subr.mxu0 0.0
    %601 = vmatpush1.msra.mxu0 0.0
    %602 = vmatprep.subr.mxu0 0.0
    %603 = vmatpush1.msra.mxu0 0.0
    %604 = vmatprep.subr.mxu0 0.0
    %605 = vmatpush1.msra.mxu0 0.0
    %606 = vmatprep.subr.mxu0 0.0
    %607 = vmatpush1.msra.mxu0 0.0
    %608 = vmatprep.subr.mxu0 0.0
    %609 = vmatpush1.msra.mxu0 0.0
    %610 = vmatprep.subr.mxu0 0.0
    %611 = vmatpush1.msra.mxu0 0.0
    %612 = vmatprep.mubr.f32.mxu0 0.0
    %613 = vmatmul.mubr.f32.gmra.mrb[0].mxu0 %v546
    %v614 = vpop.f32.mrb[0].mxu0
    %v615 = vadd.f32 0.0, %v614
    %v616 = vpop.f32.mrb[0].mxu0
    %617 = vdwg.mxu0
    %v618 = vpack.c.bf16 %v615, %v615
    %v619 = vld [vmem:[#allocation6] sm:$0xf]
    %v620 = vld [vmem:[#allocation6 + $0x4] sm:$0xf]
    %v621 = vld [vmem:[#allocation6 + $0x8] sm:$0xf]
    %v622 = vld [vmem:[#allocation6 + $0xc] sm:$0xf]
    %v623 = vld [vmem:[#allocation6 + $0x10] sm:$0xf]
    %v624 = vld [vmem:[#allocation6 + $0x14] sm:$0xf]
    %v625 = vld [vmem:[#allocation6 + $0x18] sm:$0xf]
    %v626 = vld [vmem:[#allocation6 + $0x1c] sm:$0xf]
    %v627 = vld [vmem:[#allocation6 + $0x20] sm:$0xf]
    %v628 = vld [vmem:[#allocation6 + $0x24] sm:$0xf]
    %v629 = vld [vmem:[#allocation6 + $0x28] sm:$0xf]
    %v630 = vld [vmem:[#allocation6 + $0x2c] sm:$0xf]
    %v631 = vld [vmem:[#allocation6 + $0x30] sm:$0xf]
    %v632 = vld [vmem:[#allocation6 + $0x34] sm:$0xf]
    %v633 = vld [vmem:[#allocation6 + $0x38] sm:$0xf]
    %v634 = vld [vmem:[#allocation6 + $0x3c] sm:$0xf]
    %v635 = vld [vmem:[%s5 + $0x3] sm:$0x1]
    %v636 = vlaneseq
    %v637 = vshrl.u32 %v636, 7
    %v638 = vsub.s32 0, %v637
    %v639 = vrot.slane %v635, %v638
    %v656 = vunpack.c.l.b16 %v619
    %v657 = vunpack.c.l.b16 %v620
    %v658 = vunpack.c.l.b16 %v621
    %v659 = vunpack.c.l.b16 %v622
    %v660 = vunpack.c.l.b16 %v623
    %v661 = vunpack.c.l.b16 %v624
    %v662 = vunpack.c.l.b16 %v625
    %v663 = vunpack.c.l.b16 %v626
    %v664 = vunpack.c.l.b16 %v627
    %v665 = vunpack.c.l.b16 %v628
    %v666 = vunpack.c.l.b16 %v629
    %v667 = vunpack.c.l.b16 %v630
    %v668 = vunpack.c.l.b16 %v631
    %v669 = vunpack.c.l.b16 %v632
    %v670 = vunpack.c.l.b16 %v633
    %v671 = vunpack.c.l.b16 %v634
    %v672 = vpack.c.b16 %v657, %v656
    %v673 = vpack.c.b16 %v659, %v658
    %v674 = vpack.c.b16 %v661, %v660
    %v675 = vpack.c.b16 %v663, %v662
    %v676 = vpack.c.b16 %v665, %v664
    %v677 = vpack.c.b16 %v667, %v666
    %v678 = vpack.c.b16 %v669, %v668
    %v679 = vpack.c.b16 %v671, %v670
    %688 = vmatprep.subr.bf16.mxu0 0
    %689 = vmatpush1.bf16.msra.mxu0 %v672
    %690 = vmatprep.subr.bf16.mxu0 0
    %691 = vmatpush1.bf16.msra.mxu0 %v673
    %692 = vmatprep.subr.bf16.mxu0 0
    %693 = vmatpush1.bf16.msra.mxu0 %v674
    %694 = vmatprep.subr.bf16.mxu0 0
    %695 = vmatpush1.bf16.msra.mxu0 %v675
    %696 = vmatprep.subr.bf16.mxu0 0
    %697 = vmatpush1.bf16.msra.mxu0 %v676
    %698 = vmatprep.subr.bf16.mxu0 0
    %699 = vmatpush1.bf16.msra.mxu0 %v677
    %700 = vmatprep.subr.bf16.mxu0 0
    %701 = vmatpush1.bf16.msra.mxu0 %v678
    %702 = vmatprep.subr.bf16.mxu0 0
    %703 = vmatpush1.bf16.msra.mxu0 %v679
    %704 = vmatprep.subr.bf16.mxu0 0
    %705 = vmatpush1.bf16.msra.mxu0 0
    %706 = vmatprep.subr.bf16.mxu0 0
    %707 = vmatpush1.bf16.msra.mxu0 0
    %708 = vmatprep.subr.bf16.mxu0 0
    %709 = vmatpush1.bf16.msra.mxu0 0
    %710 = vmatprep.subr.bf16.mxu0 0
    %711 = vmatpush1.bf16.msra.mxu0 0
    %712 = vmatprep.subr.bf16.mxu0 0
    %713 = vmatpush1.bf16.msra.mxu0 0
    %714 = vmatprep.subr.bf16.mxu0 0
    %715 = vmatpush1.bf16.msra.mxu0 0
    %716 = vmatprep.subr.bf16.mxu0 0
    %717 = vmatpush1.bf16.msra.mxu0 0
    %718 = vmatprep.subr.bf16.mxu0 0
    %719 = vmatpush1.bf16.msra.mxu0 0
    %720 = vmatprep.mubr.bf16.mxu0 0
    %721 = vmatmul.mubr.bf16.gmra.mrb[0].mxu0 %v618
    %v722 = vpop.f32.mrb[0].mxu0
    %v723 = vadd.f32 %v639, %v722
    %v724 = vpop.f32.mrb[0].mxu0
    %v725 = vpop.f32.mrb[0].mxu0
    %v726 = vpop.f32.mrb[0].mxu0
    %727 = vdwg.mxu0
    %v728 = vadd.f32 %v181, %v723
    %v729 = vld [vmem:[%s5 + $0x4] sm:$0x1]
    %v730 = vld [vmem:[%s5 + $0x5] sm:$0x1]
    %731 = vadd.xlane.f32.xlu0 %v728
    %v732 = vpop.xlane.xlu0 %731
    %v733 = vmul.f32 %v732, 0.03125
    %v734 = vsub.f32 %v728, %v733
    %v735 = vmul.f32 %v734, %v190
    %v736 = vmul.f32 %v735, %v735
    %737 = vadd.xlane.f32.xlu0 %v736
    %v738 = vpop.xlane.xlu0 %737
    %v739 = vmul.f32 %v738, 0.03125
    %v740 = vadd.f32 %v739, 1e-05
    %v741 = vrsqrt.pop %v740
    %v742 = vmul.f32 %v735, %v741
    %v743 = vlaneseq
    %v744 = vshrl.u32 %v743, 7
    %v745 = vsub.s32 0, %v744
    %v746 = vrot.slane %v729, %v745
    %v747 = vmul.f32 %v742, %v746
    %v748 = vlaneseq
    %v749 = vshrl.u32 %v748, 7
    %v750 = vsub.s32 0, %v749
    %v751 = vrot.slane %v730, %v750
    %v752 = vadd.f32 %v747, %v751
    %v753 = vpack.c.bf16 %v752, %v752
    %v754 = vld [vmem:[#allocation6 + $0x40] sm:$0xf]
    %v755 = vld [vmem:[#allocation6 + $0x44] sm:$0xf]
    %v756 = vld [vmem:[#allocation6 + $0x48] sm:$0xf]
    %v757 = vld [vmem:[#allocation6 + $0x4c] sm:$0xf]
    %v758 = vld [vmem:[#allocation6 + $0x50] sm:$0xf]
    %v759 = vld [vmem:[#allocation6 + $0x54] sm:$0xf]
    %v760 = vld [vmem:[#allocation6 + $0x58] sm:$0xf]
    %v761 = vld [vmem:[#allocation6 + $0x5c] sm:$0xf]
    %v762 = vld [vmem:[#allocation6 + $0x60] sm:$0xf]
    %v763 = vld [vmem:[#allocation6 + $0x64] sm:$0xf]
    %v764 = vld [vmem:[#allocation6 + $0x68] sm:$0xf]
    %v765 = vld [vmem:[#allocation6 + $0x6c] sm:$0xf]
    %v766 = vld [vmem:[#allocation6 + $0x70] sm:$0xf]
    %v767 = vld [vmem:[#allocation6 + $0x74] sm:$0xf]
    %v768 = vld [vmem:[#allocation6 + $0x78] sm:$0xf]
    %v769 = vld [vmem:[#allocation6 + $0x7c] sm:$0xf]
    %v770 = vld [vmem:[%s5 + $0x6] sm:$0x1]
    %v771 = vlaneseq
    %v772 = vshrl.u32 %v771, 7
    %v773 = vsub.s32 0, %v772
    %v774 = vrot.slane %v770, %v773
    %v791 = vunpack.c.l.b16 %v754
    %v792 = vunpack.c.l.b16 %v755
    %v793 = vunpack.c.l.b16 %v756
    %v794 = vunpack.c.l.b16 %v757
    %v795 = vunpack.c.l.b16 %v758
    %v796 = vunpack.c.l.b16 %v759
    %v797 = vunpack.c.l.b16 %v760
    %v798 = vunpack.c.l.b16 %v761
    %v799 = vunpack.c.l.b16 %v762
    %v800 = vunpack.c.l.b16 %v763
    %v801 = vunpack.c.l.b16 %v764
    %v802 = vunpack.c.l.b16 %v765
    %v803 = vunpack.c.l.b16 %v766
    %v804 = vunpack.c.l.b16 %v767
    %v805 = vunpack.c.l.b16 %v768
    %v806 = vunpack.c.l.b16 %v769
    %v807 = vpack.c.b16 %v792, %v791
    %v808 = vpack.c.b16 %v794, %v793
    %v809 = vpack.c.b16 %v796, %v795
    %v810 = vpack.c.b16 %v798, %v797
    %v811 = vpack.c.b16 %v800, %v799
    %v812 = vpack.c.b16 %v802, %v801
    %v813 = vpack.c.b16 %v804, %v803
    %v814 = vpack.c.b16 %v806, %v805
    %823 = vmatprep.subr.bf16.mxu0 0
    %824 = vmatpush1.bf16.msra.mxu0 %v807
    %825 = vmatprep.subr.bf16.mxu0 0
    %826 = vmatpush1.bf16.msra.mxu0 %v808
    %827 = vmatprep.subr.bf16.mxu0 0
    %828 = vmatpush1.bf16.msra.mxu0 %v809
    %829 = vmatprep.subr.bf16.mxu0 0
    %830 = vmatpush1.bf16.msra.mxu0 %v810
    %831 = vmatprep.subr.bf16.mxu0 0
    %832 = vmatpush1.bf16.msra.mxu0 %v811
    %833 = vmatprep.subr.bf16.mxu0 0
    %834 = vmatpush1.bf16.msra.mxu0 %v812
    %835 = vmatprep.subr.bf16.mxu0 0
    %836 = vmatpush1.bf16.msra.mxu0 %v813
    %837 = vmatprep.subr.bf16.mxu0 0
    %838 = vmatpush1.bf16.msra.mxu0 %v814
    %839 = vmatprep.subr.bf16.mxu0 0
    %840 = vmatpush1.bf16.msra.mxu0 0
    %841 = vmatprep.subr.bf16.mxu0 0
    %842 = vmatpush1.bf16.msra.mxu0 0
    %843 = vmatprep.subr.bf16.mxu0 0
    %844 = vmatpush1.bf16.msra.mxu0 0
    %845 = vmatprep.subr.bf16.mxu0 0
    %846 = vmatpush1.bf16.msra.mxu0 0
    %847 = vmatprep.subr.bf16.mxu0 0
    %848 = vmatpush1.bf16.msra.mxu0 0
    %849 = vmatprep.subr.bf16.mxu0 0
    %850 = vmatpush1.bf16.msra.mxu0 0
    %851 = vmatprep.subr.bf16.mxu0 0
    %852 = vmatpush1.bf16.msra.mxu0 0
    %853 = vmatprep.subr.bf16.mxu0 0
    %854 = vmatpush1.bf16.msra.mxu0 0
    %855 = vmatprep.mubr.bf16.mxu0 0
    %856 = vmatmul.mubr.bf16.gmra.mrb[0].mxu0 %v753
    %v857 = vpop.f32.mrb[0].mxu0
    %v858 = vadd.f32 %v774, %v857
    %v859 = vpop.f32.mrb[0].mxu0
    %v860 = vpop.f32.mrb[0].mxu0
    %v861 = vpop.f32.mrb[0].mxu0
    %862 = vdwg.mxu0
    %v863 = vmul.f32 %v858, 0.5
    %v864 = vmul.f32 %v858, 0.70710677
    %v865 = vand.u32 2147483647, %v864
    %v866 = vmul.f32 %v865, 0.3275911
    %v867 = vadd.f32 %v866, 1.0
    %v868 = vrcp.pop %v867
    %v869 = vmul.f32 1.0, %v868
    %v870 = vmul.f32 %v869, 1.0614054
    %v871 = vsub.f32 %v870, 1.4531521
    %v872 = vmul.f32 %v871, %v869
    %v873 = vadd.f32 %v872, 1.4214138
    %v874 = vmul.f32 %v873, %v869
    %v875 = vsub.f32 %v874, 0.28449672
    %v876 = vmul.f32 %v875, %v869
    %v877 = vadd.f32 %v876, 0.2548296
    %v878 = vmul.f32 %v877, %v869
    %v879 = vsub.f32 0.0, %v865
    %v880 = vmul.f32 %v879, %v865
    %v881 = vmul.f32 %v880, 1.442695
    %v882 = vpow.pop %v881
    %v883 = vmul.f32 %v878, %v882
    %v884 = vsub.f32 1.0, %v883
    %vm885 = vcmp.ge.f32.partialorder %v864, 0.0
    %v886 = vsub.f32 0.0, %v884
    %v887 = vsel %vm885, %v884, %v886
    %v888 = vadd.f32 %v887, 1.0
    %v889 = vmul.f32 %v863, %v888
    %v890 = vpack.c.bf16 %v889, %v889
    %v891 = vld [vmem:[#allocation6 + $0x80] sm:$0xf]
    %v892 = vld [vmem:[#allocation6 + $0x84] sm:$0xf]
    %v893 = vld [vmem:[#allocation6 + $0x88] sm:$0xf]
    %v894 = vld [vmem:[#allocation6 + $0x8c] sm:$0xf]
    %v895 = vld [vmem:[#allocation6 + $0x90] sm:$0xf]
    %v896 = vld [vmem:[#allocation6 + $0x94] sm:$0xf]
    %v897 = vld [vmem:[#allocation6 + $0x98] sm:$0xf]
    %v898 = vld [vmem:[#allocation6 + $0x9c] sm:$0xf]
    %v899 = vld [vmem:[#allocation6 + $0xa0] sm:$0xf]
    %v900 = vld [vmem:[#allocation6 + $0xa4] sm:$0xf]
    %v901 = vld [vmem:[#allocation6 + $0xa8] sm:$0xf]
    %v902 = vld [vmem:[#allocation6 + $0xac] sm:$0xf]
    %v903 = vld [vmem:[#allocation6 + $0xb0] sm:$0xf]
    %v904 = vld [vmem:[#allocation6 + $0xb4] sm:$0xf]
    %v905 = vld [vmem:[#allocation6 + $0xb8] sm:$0xf]
    %v906 = vld [vmem:[#allocation6 + $0xbc] sm:$0xf]
    %v907 = vld [vmem:[%s5 + $0x7] sm:$0x1]
    %v908 = vlaneseq
    %v909 = vshrl.u32 %v908, 7
    %v910 = vsub.s32 0, %v909
    %v911 = vrot.slane %v907, %v910
    %v928 = vunpack.c.l.b16 %v891
    %v929 = vunpack.c.l.b16 %v892
    %v930 = vunpack.c.l.b16 %v893
    %v931 = vunpack.c.l.b16 %v894
    %v932 = vunpack.c.l.b16 %v895
    %v933 = vunpack.c.l.b16 %v896
    %v934 = vunpack.c.l.b16 %v897
    %v935 = vunpack.c.l.b16 %v898
    %v936 = vunpack.c.l.b16 %v899
    %v937 = vunpack.c.l.b16 %v900
    %v938 = vunpack.c.l.b16 %v901
    %v939 = vunpack.c.l.b16 %v902
    %v940 = vunpack.c.l.b16 %v903
    %v941 = vunpack.c.l.b16 %v904
    %v942 = vunpack.c.l.b16 %v905
    %v943 = vunpack.c.l.b16 %v906
    %v944 = vpack.c.b16 %v929, %v928
    %v945 = vpack.c.b16 %v931, %v930
    %v946 = vpack.c.b16 %v933, %v932
    %v947 = vpack.c.b16 %v935, %v934
    %v948 = vpack.c.b16 %v937, %v936
    %v949 = vpack.c.b16 %v939, %v938
    %v950 = vpack.c.b16 %v941, %v940
    %v951 = vpack.c.b16 %v943, %v942
    %960 = vmatprep.subr.bf16.mxu0 0
    %961 = vmatpush1.bf16.msra.mxu0 %v944
    %962 = vmatprep.subr.bf16.mxu0 0
    %963 = vmatpush1.bf16.msra.mxu0 %v945
    %964 = vmatprep.subr.bf16.mxu0 0
    %965 = vmatpush1.bf16.msra.mxu0 %v946
    %966 = vmatprep.subr.bf16.mxu0 0
    %967 = vmatpush1.bf16.msra.mxu0 %v947
    %968 = vmatprep.subr.bf16.mxu0 0
    %969 = vmatpush1.bf16.msra.mxu0 %v948
    %970 = vmatprep.subr.bf16.mxu0 0
    %971 = vmatpush1.bf16.msra.mxu0 %v949
    %972 = vmatprep.subr.bf16.mxu0 0
    %973 = vmatpush1.bf16.msra.mxu0 %v950
    %974 = vmatprep.subr.bf16.mxu0 0
    %975 = vmatpush1.bf16.msra.mxu0 %v951
    %976 = vmatprep.subr.bf16.mxu0 0
    %977 = vmatpush1.bf16.msra.mxu0 0
    %978 = vmatprep.subr.bf16.mxu0 0
    %979 = vmatpush1.bf16.msra.mxu0 0
    %980 = vmatprep.subr.bf16.mxu0 0
    %981 = vmatpush1.bf16.msra.mxu0 0
    %982 = vmatprep.subr.bf16.mxu0 0
    %983 = vmatpush1.bf16.msra.mxu0 0
    %984 = vmatprep.subr.bf16.mxu0 0
    %985 = vmatpush1.bf16.msra.mxu0 0
    %986 = vmatprep.subr.bf16.mxu0 0
    %987 = vmatpush1.bf16.msra.mxu0 0
    %988 = vmatprep.subr.bf16.mxu0 0
    %989 = vmatpush1.bf16.msra.mxu0 0
    %990 = vmatprep.subr.bf16.mxu0 0
    %991 = vmatpush1.bf16.msra.mxu0 0
    %992 = vmatprep.mubr.bf16.mxu0 0
    %993 = vmatmul.mubr.bf16.gmra.mrb[0].mxu0 %v890
    %v994 = vpop.f32.mrb[0].mxu0
    %v995 = vadd.f32 %v911, %v994
    %v996 = vpop.f32.mrb[0].mxu0
    %v997 = vpop.f32.mrb[0].mxu0
    %v998 = vpop.f32.mrb[0].mxu0
    %999 = vdwg.mxu0
    %v1000 = vadd.f32 %v752, %v995
    %v1001 = vld [vmem:[%s5 + $0x8] sm:$0x1]
    %v1002 = vld [vmem:[%s5 + $0x9] sm:$0x1]
    %1003 = vadd.xlane.f32.xlu0 %v1000
    %v1004 = vpop.xlane.xlu0 %1003
    %v1005 = vmul.f32 %v1004, 0.03125
    %v1006 = vsub.f32 %v1000, %v1005
    %v1007 = vmul.f32 %v1006, %v190
    %v1008 = vmul.f32 %v1007, %v1007
    %1009 = vadd.xlane.f32.xlu0 %v1008
    %v1010 = vpop.xlane.xlu0 %1009
    %v1011 = vmul.f32 %v1010, 0.03125
    %v1012 = vadd.f32 %v1011, 1e-05
    %v1013 = vrsqrt.pop %v1012
    %v1014 = vmul.f32 %v1007, %v1013
    %v1015 = vlaneseq
    %v1016 = vshrl.u32 %v1015, 7
    %v1017 = vsub.s32 0, %v1016
    %v1018 = vrot.slane %v1001, %v1017
    %v1019 = vmul.f32 %v1014, %v1018
    %v1020 = vlaneseq
    %v1021 = vshrl.u32 %v1020, 7
    %v1022 = vsub.s32 0, %v1021
    %v1023 = vrot.slane %v1002, %v1022
    %v1024 = vadd.f32 %v1019, %v1023
    %v1025 = vld [vmem:[%s5 + $0xa] sm:$0x1]
    %v1026 = vld [vmem:[%s5 + $0xb] sm:$0x1]
    %1027 = vadd.xlane.f32.xlu0 %v1024
    %v1028 = vpop.xlane.xlu0 %1027
    %v1029 = vmul.f32 %v1028, 0.03125
    %v1030 = vsub.f32 %v1024, %v1029
    %v1031 = vmul.f32 %v1030, %v190
    %v1032 = vmul.f32 %v1031, %v1031
    %1033 = vadd.xlane.f32.xlu0 %v1032
    %v1034 = vpop.xlane.xlu0 %1033
    %v1035 = vmul.f32 %v1034, 0.03125
    %v1036 = vadd.f32 %v1035, 1e-05
    %v1037 = vrsqrt.pop %v1036
    %v1038 = vmul.f32 %v1031, %v1037
    %v1039 = vlaneseq
    %v1040 = vshrl.u32 %v1039, 7
    %v1041 = vsub.s32 0, %v1040
    %v1042 = vrot.slane %v1025, %v1041
    %v1043 = vmul.f32 %v1038, %v1042
    %v1044 = vlaneseq
    %v1045 = vshrl.u32 %v1044, 7
    %v1046 = vsub.s32 0, %v1045
    %v1047 = vrot.slane %v1026, %v1046
    %v1048 = vadd.f32 %v1043, %v1047
    %v1049 = vpack.c.bf16 %v1048, %v1048
    %v1050 = vld [vmem:[#allocation6 + $0xc0] sm:$0xf]
    %v1051 = vld [vmem:[#allocation6 + $0xc4] sm:$0xf]
    %v1052 = vld [vmem:[#allocation6 + $0xc8] sm:$0xf]
    %v1053 = vld [vmem:[#allocation6 + $0xcc] sm:$0xf]
    %v1054 = vld [vmem:[#allocation6 + $0xd0] sm:$0xf]
    %v1055 = vld [vmem:[#allocation6 + $0xd4] sm:$0xf]
    %v1056 = vld [vmem:[#allocation6 + $0xd8] sm:$0xf]
    %v1057 = vld [vmem:[#allocation6 + $0xdc] sm:$0xf]
    %v1058 = vld [vmem:[#allocation6 + $0xe0] sm:$0xf]
    %v1059 = vld [vmem:[#allocation6 + $0xe4] sm:$0xf]
    %v1060 = vld [vmem:[#allocation6 + $0xe8] sm:$0xf]
    %v1061 = vld [vmem:[#allocation6 + $0xec] sm:$0xf]
    %v1062 = vld [vmem:[#allocation6 + $0xf0] sm:$0xf]
    %v1063 = vld [vmem:[#allocation6 + $0xf4] sm:$0xf]
    %v1064 = vld [vmem:[#allocation6 + $0xf8] sm:$0xf]
    %v1065 = vld [vmem:[#allocation6 + $0xfc] sm:$0xf]
    %v1066 = vld [vmem:[%s5 + $0xc] sm:$0x1]
    %v1067 = vlaneseq
    %v1068 = vshrl.u32 %v1067, 7
    %v1069 = vsub.s32 0, %v1068
    %v1070 = vrot.slane %v1066, %v1069
    %v1087 = vunpack.c.l.b16 %v1050
    %v1088 = vunpack.c.l.b16 %v1051
    %v1089 = vunpack.c.l.b16 %v1052
    %v1090 = vunpack.c.l.b16 %v1053
    %v1091 = vunpack.c.l.b16 %v1054
    %v1092 = vunpack.c.l.b16 %v1055
    %v1093 = vunpack.c.l.b16 %v1056
    %v1094 = vunpack.c.l.b16 %v1057
    %v1095 = vunpack.c.l.b16 %v1058
    %v1096 = vunpack.c.l.b16 %v1059
    %v1097 = vunpack.c.l.b16 %v1060
    %v1098 = vunpack.c.l.b16 %v1061
    %v1099 = vunpack.c.l.b16 %v1062
    %v1100 = vunpack.c.l.b16 %v1063
    %v1101 = vunpack.c.l.b16 %v1064
    %v1102 = vunpack.c.l.b16 %v1065
    %v1103 = vpack.c.b16 %v1088, %v1087
    %v1104 = vpack.c.b16 %v1090, %v1089
    %v1105 = vpack.c.b16 %v1092, %v1091
    %v1106 = vpack.c.b16 %v1094, %v1093
    %v1107 = vpack.c.b16 %v1096, %v1095
    %v1108 = vpack.c.b16 %v1098, %v1097
    %v1109 = vpack.c.b16 %v1100, %v1099
    %v1110 = vpack.c.b16 %v1102, %v1101
    %1119 = vmatprep.subr.bf16.mxu0 0
    %1120 = vmatpush1.bf16.msra.mxu0 %v1103
    %1121 = vmatprep.subr.bf16.mxu0 0
    %1122 = vmatpush1.bf16.msra.mxu0 %v1104
    %1123 = vmatprep.subr.bf16.mxu0 0
    %1124 = vmatpush1.bf16.msra.mxu0 %v1105
    %1125 = vmatprep.subr.bf16.mxu0 0
    %1126 = vmatpush1.bf16.msra.mxu0 %v1106
    %1127 = vmatprep.subr.bf16.mxu0 0
    %1128 = vmatpush1.bf16.msra.mxu0 %v1107
    %1129 = vmatprep.subr.bf16.mxu0 0
    %1130 = vmatpush1.bf16.msra.mxu0 %v1108
    %1131 = vmatprep.subr.bf16.mxu0 0
    %1132 = vmatpush1.bf16.msra.mxu0 %v1109
    %1133 = vmatprep.subr.bf16.mxu0 0
    %1134 = vmatpush1.bf16.msra.mxu0 %v1110
    %1135 = vmatprep.subr.bf16.mxu0 0
    %1136 = vmatpush1.bf16.msra.mxu0 0
    %1137 = vmatprep.subr.bf16.mxu0 0
    %1138 = vmatpush1.bf16.msra.mxu0 0
    %1139 = vmatprep.subr.bf16.mxu0 0
    %1140 = vmatpush1.bf16.msra.mxu0 0
    %1141 = vmatprep.subr.bf16.mxu0 0
    %1142 = vmatpush1.bf16.msra.mxu0 0
    %1143 = vmatprep.subr.bf16.mxu0 0
    %1144 = vmatpush1.bf16.msra.mxu0 0
    %1145 = vmatprep.subr.bf16.mxu0 0
    %1146 = vmatpush1.bf16.msra.mxu0 0
    %1147 = vmatprep.subr.bf16.mxu0 0
    %1148 = vmatpush1.bf16.msra.mxu0 0
    %1149 = vmatprep.subr.bf16.mxu0 0
    %1150 = vmatpush1.bf16.msra.mxu0 0
    %1151 = vmatprep.mubr.bf16.mxu0 0
    %1152 = vmatmul.mubr.bf16.gmra.mrb[0].mxu0 %v1049
    %v1153 = vpop.f32.mrb[0].mxu0
    %v1154 = vadd.f32 %v1070, %v1153
    %v1155 = vpop.f32.mrb[0].mxu0
    %v1156 = vpop.f32.mrb[0].mxu0
    %v1157 = vpop.f32.mrb[0].mxu0
    %1158 = vdwg.mxu0
    %1159 = vst [vmem:[%s6] sm:$0xff] %v1154
    // Predicated region
    $region38: #{single_classifier_forward.1} parent=1 // pred_check
      _
    $region39: #{single_classifier_forward.1} parent=1 // pred_check_branch
      %1161 = sbr.rel (0) target = $region41
    $region40: #{single_classifier_forward.1} parent=1 // pred_region
      _
    $region41: #{single_classifier_forward.1} parent=1 // pred_fallthru
      _
    // Predicated region
    $region42: #{single_classifier_forward.1} parent=1 // pred_check
      _
    $region43: #{single_classifier_forward.1} parent=1 // pred_check_branch
      %1163 = sbr.rel (0) target = $region45
    $region44: #{single_classifier_forward.1} parent=1 // pred_region
      _
    $region45: #{single_classifier_forward.1} parent=1 // pred_fallthru
      _
    %1164 = vsyncpa [#allocation3], 1
    %1165 = vsyncpa [#allocation5], 1

</llo_original>
